<compile_context>
chip_gen: v5e
topology: v5e:2x2
jax: 0.10.0
libtpu: 0.0.40
codegen_flags: <defaults>
</compile_context>

<pallas_src>
from functools import partial

import jax
import jax.numpy as jnp
from jax import lax
from jax.experimental import pallas as pl
from jax.experimental.pallas import tpu as pltpu


# ----------------------------------------------------------------------------- #
# Fused Pallas kernel
# ----------------------------------------------------------------------------- #
def resblock_kernel(xin_ref, w1_ref, wid_ref, w2_ref, b1_ref, bout_ref, o_ref,
                    p1s_ref, y1p_ref, p2s_ref, *, nb, Ho, Wo, kh, kw, Ct, C1):
    """One grid step processes `nb` samples (Mb = nb*Ho*Wo GEMM rows).

    xin_ref  : (nb, Ho+kh-1, Wo+kw-1, Ct) zero-padded input; space-to-depth if
                                          stride 2, so every slice below is a
                                          unit-stride window copy.
    w1_ref   : (kh*kw*Ct, C1)   conv1 weight, BN1 scale folded in
    wid_ref  : (kh*kw*Ct, C2)   identity weight (AvgPool 1/4 divisor, 1x1
                                idconv and BNid scale all folded in)
    w2_ref   : (9*C1, C2)       conv2 weight, BN2 scale folded in
    b1_ref   : (1, C1)          BN1 bias
    bout_ref : (1, C2)          BN2 bias + BNid bias (combined)
    o_ref    : (nb, Ho, Wo, C2) block output (NHWC)
    p1s_ref  : (Mb, kh*kw*Ct)   VMEM slab: conv1 / identity im2col patches
    y1p_ref  : (nb, Ho+2, Wo+2, C1) VMEM: zero-halo-padded y1 for conv2 taps
    p2s_ref  : (Mb, 9*C1)       VMEM slab: conv2 im2col patches
    """
    Mb = nb * Ho * Wo
    C2 = o_ref.shape[-1]

    # ---- conv1 / identity patch slab, built in VMEM from x itself (no
    #      HBM-side im2col): kh*kw unit-stride window copies.
    t = 0
    for dy in range(kh):
        for dx in range(kw):
            p1s_ref[:, t * Ct:(t + 1) * Ct] = (
                xin_ref[:, dy:dy + Ho, dx:dx + Wo, :].reshape(Mb, Ct))
            t += 1
    patches = p1s_ref[...]

    # ---- conv1 + BN1 + ReLU: one GEMM (default MXU precision, f32 acc)
    y1 = jnp.dot(patches, w1_ref[...], preferred_element_type=jnp.float32)
    y1 = jnp.maximum(y1 + b1_ref[...], 0.0)                        # (Mb, C1)

    # ---- identity branch (pool + 1x1 idconv + BN folded) reuses the SAME
    #      patch slab and starts the residual accumulator.
    acc = jnp.dot(patches, wid_ref[...], preferred_element_type=jnp.float32)

    # ---- stage y1 into the zero-padded scratch.  The interior is fully
    #      overwritten every step, so only the 1-pixel halo is cleared.
    zrow = jnp.zeros((nb, 1, Wo + 2, C1), jnp.float32)
    zcol = jnp.zeros((nb, Ho + 2, 1, C1), jnp.float32)
    y1p_ref[:, 0:1, :, :] = zrow
    y1p_ref[:, Ho + 1:Ho + 2, :, :] = zrow
    y1p_ref[:, :, 0:1, :] = zcol
    y1p_ref[:, :, Wo + 1:Wo + 2, :] = zcol
    y1p_ref[:, 1:1 + Ho, 1:1 + Wo, :] = y1.reshape(nb, Ho, Wo, C1)

    # ---- conv2 (3x3, stride 1) + BN2 as ONE K=9*C1 GEMM: 9 unit-stride window
    #      copies into a slab, accumulate in the MXU f32 accumulator.
    for ky in range(3):
        for kx in range(3):
            tt = ky * 3 + kx
            p2s_ref[:, tt * C1:(tt + 1) * C1] = (
                y1p_ref[:, ky:ky + Ho, kx:kx + Wo, :].reshape(Mb, C1))
    acc = acc + jnp.dot(p2s_ref[...], w2_ref[...],
                        preferred_element_type=jnp.float32)

    # ---- fused residual-add + bias + ReLU on the way out.  C2 sits on lanes:
    #      lane-dense at real widths (>=128); see module TODO for small C2.
    out = jnp.maximum(acc + bout_ref[...], 0.0)
    o_ref[...] = out.reshape(nb, Ho, Wo, C2).astype(o_ref.dtype)


# ----------------------------------------------------------------------------- #
# Wrapper glue: BN/pool folding, space-to-depth plumbing, pallas_call setup
# ----------------------------------------------------------------------------- #
def fold_bn(gamma, beta, mean, var, eps=1e-5):
    scale = gamma / jnp.sqrt(var + eps)
    return scale, beta - mean * scale


def resblock_forward(params, x):
    """x: NHWC float32.  Whole ResBlock = ONE fused pallas_call."""
    convs = params["convs"]
    # TODO(synk): expansion != 1 (1x1 -> 3x3 -> 1x1 bottleneck) not implemented
    # in the fused kernel; only the expansion==1 two-3x3-conv path is handled.
    assert len(convs) == 2 and convs[0]["ks"] == 3 and convs[1]["ks"] == 3
    l1, l2 = convs
    stride = params["stride"]
    assert stride in (1, 2)
    N, H, W, Cin = x.shape
    C1 = l1["w"].shape[-1]
    C2 = l2["w"].shape[-1]

    # ---- constant folding: BN scale/bias, AvgPool 1/4 divisor, idconv weight
    s1, b1 = fold_bn(l1["gamma"], l1["beta"], l1["mean"], l1["var"])
    s2, b2 = fold_bn(l2["gamma"], l2["beta"], l2["mean"], l2["var"])
    w2f = (l2["w"] * s2[None, None, None, :]).reshape(9 * C1, C2)

    idp = params.get("idconv")
    if idp is None:
        w_id0 = jnp.eye(Cin, dtype=x.dtype)
        sid = jnp.ones((C2,), x.dtype)
        bid = jnp.zeros((C2,), x.dtype)
    else:
        w_id0 = idp["w"][0, 0]
        sid, bid = fold_bn(idp["gamma"], idp["beta"], idp["mean"], idp["var"])
    wid0 = w_id0 * sid[None, :]                               # (Cin, C2)

    # ---- layout plumbing (HBM footprint ~= |x|, read exactly once by kernel)
    xp = jnp.pad(x, ((0, 0), (1, 1), (1, 1), (0, 0)))
    if stride == 1:
        Ho, Wo, kh, kw, Ct = H, W, 3, 3, Cin
        xin = xp                                              # (N, H+2, W+2, Cin)
        w1f = (l1["w"] * s1[None, None, None, :]).reshape(9 * Cin, C1)
        # identity branch = center tap of the 3x3 slab only
        widf = (jnp.zeros((3, 3, Cin, C2), x.dtype).at[1, 1].set(wid0)
                .reshape(9 * Cin, C2))
    else:
        # stride 2: space-to-depth of the padded input so every in-kernel
        # slice is unit-stride and pool+idconv share conv1's patch slab.
        # TODO(synk): AvgPool2d ceil_mode partial-window divisor for odd H/W
        # is not handled (exact for even spatial dims, as used here).
        assert H % 2 == 0 and W % 2 == 0
        Ho, Wo, kh, kw, Ct = H // 2, W // 2, 2, 2, 4 * Cin
        Hs, Ws = Ho + 1, Wo + 1
        xin = (xp.reshape(N, Hs, 2, Ws, 2, Cin)
                 .transpose(0, 1, 3, 2, 4, 5)
                 .reshape(N, Hs, Ws, Ct))
        # conv1 3x3/s2 -> 2x2/s1 conv over super-pixels: original tap ky maps
        # to (super KY=ky//2, sub dy=ky%2); (KY=1, dy=1) groups stay zero.
        w1s = l1["w"] * s1[None, None, None, :]
        w1sd = jnp.zeros((2, 2, 2, 2, Cin, C1), x.dtype)
        for ky in range(3):
            for kx in range(3):
                w1sd = w1sd.at[ky // 2, kx // 2, ky % 2, kx % 2].set(w1s[ky, kx])
        w1f = w1sd.reshape(4 * Ct, C1)
        # AvgPool2d(2) (on the unpadded x => sub-offsets shifted by the pad)
        # + 1x1 idconv + BNid scale folded into 4 taps of weight 1/4.
        wsd = jnp.zeros((2, 2, 2, 2, Cin, C2), x.dtype)
        q = 0.25 * wid0
        wsd = wsd.at[0, 0, 1, 1].set(q)
        wsd = wsd.at[0, 1, 1, 0].set(q)
        wsd = wsd.at[1, 0, 0, 1].set(q)
        wsd = wsd.at[1, 1, 0, 0].set(q)
        widf = wsd.reshape(4 * Ct, C2)

    K1 = kh * kw * Ct
    Hb, Wb = Ho + kh - 1, Wo + kw - 1                         # xin block spatial
    b1r = b1.reshape(1, C1)
    boutr = (b2 + bid).reshape(1, C2)

    # ---- samples-per-step tile: VMEM byte budget (conservative for v7x's
    #      64 MiB physical VMEM), and keep grid >= 2 whenever N >= 2 so both
    #      v7x TensorCores get work and the input DMA pipelines with compute.
    per_sample = 4 * (2 * Hb * Wb * Ct                        # dbl-buffered xin
                      + 2 * Ho * Wo * C2                      # dbl-buffered out
                      + Ho * Wo * (K1 + 9 * C1)               # p1s + p2s slabs
                      + (Ho + 2) * (Wo + 2) * C1)             # padded-y1 scratch
    fixed = 4 * 2 * (K1 * (C1 + C2) + 9 * C1 * C2 + C1 + C2)  # weights/bias
    budget = 24 * 1024 * 1024
    nb = max(1, min(N, (budget - fixed) // max(per_sample, 1)))
    if N >= 2:
        nb = min(nb, N // 2)
    while N % nb:
        nb -= 1
    Mb = nb * Ho * Wo
    grid = (N // nb,)

    kern = partial(resblock_kernel, nb=nb, Ho=Ho, Wo=Wo, kh=kh, kw=kw,
                   Ct=Ct, C1=C1)
    out = pl.pallas_call(
        kern,
        out_shape=jax.ShapeDtypeStruct((N, Ho, Wo, C2), jnp.float32),
        grid=grid,
        in_specs=[
            pl.BlockSpec((nb, Hb, Wb, Ct), lambda b: (b, 0, 0, 0)),
            pl.BlockSpec((K1, C1), lambda b: (0, 0)),
            pl.BlockSpec((K1, C2), lambda b: (0, 0)),
            pl.BlockSpec((9 * C1, C2), lambda b: (0, 0)),
            pl.BlockSpec((1, C1), lambda b: (0, 0)),
            pl.BlockSpec((1, C2), lambda b: (0, 0)),
        ],
        out_specs=pl.BlockSpec((nb, Ho, Wo, C2), lambda b: (b, 0, 0, 0)),
        scratch_shapes=[
            pltpu.VMEM((Mb, K1), jnp.float32),                 # conv1/id slab
            pltpu.VMEM((nb, Ho + 2, Wo + 2, C1), jnp.float32), # padded y1
            pltpu.VMEM((Mb, 9 * C1), jnp.float32),             # conv2 slab
        ],
        compiler_params=pltpu.CompilerParams(
            dimension_semantics=("parallel",),
            vmem_limit_bytes=32 * 1024 * 1024,
        ),
    )(xin, w1f, widf, w2f, b1r, boutr)

    return out


# ----------------------------------------------------------------------------- #
# ResBlock parameters (deterministic) + pure-JAX reference
# ----------------------------------------------------------------------------- #
def make_resblock_params(key, expansion, ni, nh, stride):
    nf, ni_e = nh * expansion, ni * expansion
    if expansion == 1:
        specs = [(ni_e, nh, 3, stride, True), (nh, nf, 3, 1, False)]
    else:
        specs = [(ni_e, nh, 1, 1, True), (nh, nh, 3, stride, True), (nh, nf, 1, 1, False)]

    def bn_and_conv(key, cin, cout, ks):
        k1, k2, k3, k4, k5 = jax.random.split(key, 5)
        return dict(
            w=jax.random.normal(k1, (ks, ks, cin, cout), jnp.float32) * 0.1,
            gamma=1.0 + 0.1 * jax.random.normal(k2, (cout,), jnp.float32),
            beta=0.1 * jax.random.normal(k3, (cout,), jnp.float32),
            mean=0.1 * jax.random.normal(k4, (cout,), jnp.float32),
            var=jax.random.uniform(k5, (cout,), jnp.float32, 0.5, 1.5),
        )

    params = {"convs": [], "stride": stride}
    for (cin, cout, ks, st, act) in specs:
        key, sub = jax.random.split(key)
        layer = bn_and_conv(sub, cin, cout, ks)
        layer.update(stride=st, act=act, ks=ks)
        params["convs"].append(layer)
    if ni_e != nf:
        key, sub = jax.random.split(key)
        params["idconv"] = bn_and_conv(sub, ni_e, nf, 1)
    return params


def ref_resblock(params, x):
    def cbn(z, layer):
        scale, bias = fold_bn(layer["gamma"], layer["beta"], layer["mean"], layer["var"])
        p = layer["ks"] // 2
        z = lax.conv_general_dilated(
            z, layer["w"], (layer["stride"],) * 2, [(p, p), (p, p)],
            dimension_numbers=("NHWC", "HWIO", "NHWC"),
            precision=lax.Precision.HIGHEST)
        z = z * scale + bias
        return jnp.maximum(z, 0.0) if layer["act"] else z

    y = x
    for layer in params["convs"]:
        y = cbn(y, layer)

    xi = x
    if params["stride"] != 1:
        N, H, W, C = x.shape
        xi = x.reshape(N, H // 2, 2, W // 2, 2, C).mean(axis=(2, 4))
    idp = params.get("idconv")
    if idp is not None:
        scale, bias = fold_bn(idp["gamma"], idp["beta"], idp["mean"], idp["var"])
        xi = jnp.einsum("nhwc,cd->nhwd", xi, idp["w"][0, 0],
                        precision=lax.Precision.HIGHEST) * scale + bias
    return jnp.maximum(y + xi, 0.0)


# ----------------------------------------------------------------------------- #
if __name__ == "__main__":
    # ResBlock(expansion=1, ni=4, nh=8, stride=2):
    #   convs  = conv3x3(4->8, s=2)+BN+ReLU , conv3x3(8->8)+BN (zero_bn)
    #   idconv = conv1x1(4->8)+BN ;  pool = AvgPool2d(2, ceil_mode=True)
    expansion, ni, nh, stride = 1, 4, 8, 2

    key = jax.random.PRNGKey(0)
    kx_, kp = jax.random.split(key)

    # PyTorch input is NCHW: (N=2, C=4, H=16, W=16); transpose once to NHWC.
    x_nchw = jax.random.normal(kx_, (2, ni * expansion, 16, 16), jnp.float32)
    x = jnp.transpose(x_nchw, (0, 2, 3, 1))

    params = make_resblock_params(kp, expansion, ni, nh, stride)

    fwd = jax.jit(lambda xx: resblock_forward(params, xx))
    out = jax.block_until_ready(fwd(x))
    ref = jax.block_until_ready(ref_resblock(params, x))

    assert out.shape == ref.shape == (2, 8, 8, nh * expansion), out.shape
    max_err = float(jnp.max(jnp.abs(out - ref)))
    # Kernel GEMMs run at default MXU precision (f32 accumulation) vs the
    # HIGHEST-precision reference -> tolerance loosened accordingly.
    assert jnp.allclose(out, ref, atol=3e-2, rtol=3e-2), max_err

    print("KERNEL_OK")
</pallas_src>

<mosaic_0001>
module attributes {stable_mosaic.version = 11 : i64} {
  func.func @resblock_kernel(%arg0: i32, %arg1: memref<1x9x9x16xf32, #tpu.memory_space<vmem>>, %arg2: memref<64x8xf32, #tpu.memory_space<vmem>>, %arg3: memref<64x8xf32, #tpu.memory_space<vmem>>, %arg4: memref<72x8xf32, #tpu.memory_space<vmem>>, %arg5: memref<1x8xf32, #tpu.memory_space<vmem>>, %arg6: memref<1x8xf32, #tpu.memory_space<vmem>>, %arg7: memref<1x8x8x8xf32, #tpu.memory_space<vmem>>, %arg8: memref<64x64xf32, #tpu.memory_space<vmem>>, %arg9: memref<1x10x10x8xf32, #tpu.memory_space<vmem>>, %arg10: memref<64x72xf32, #tpu.memory_space<vmem>>) attributes {dimension_semantics = [#tpu.dimension_semantics<parallel>], iteration_bounds = array<i64: 2>, scalar_prefetch = 0 : i64, scratch_operands = 3 : i64, tpu.core_type = #tpu.core_type<tc>, window_params = [{transform_indices = @transform_0, window_bounds = array<i64: 1, 9, 9, 16>}, {pipeline_mode = #tpu.pipeline_mode<synchronous>, transform_indices = @transform_1, window_bounds = array<i64: 64, 8>}, {pipeline_mode = #tpu.pipeline_mode<synchronous>, transform_indices = @transform_2, window_bounds = array<i64: 64, 8>}, {pipeline_mode = #tpu.pipeline_mode<synchronous>, transform_indices = @transform_3, window_bounds = array<i64: 72, 8>}, {pipeline_mode = #tpu.pipeline_mode<synchronous>, transform_indices = @transform_4, window_bounds = array<i64: 1, 8>}, {pipeline_mode = #tpu.pipeline_mode<synchronous>, transform_indices = @transform_5, window_bounds = array<i64: 1, 8>}, {transform_indices = @transform_6, window_bounds = array<i64: 1, 8, 8, 8>}]} {
    %c0 = arith.constant 0 : index
    %c0_0 = arith.constant 0 : index
    %c0_1 = arith.constant 0 : index
    %c0_2 = arith.constant 0 : index
    %0 = vector.load %arg1[%c0, %c0_0, %c0_1, %c0_2] : memref<1x9x9x16xf32, #tpu.memory_space<vmem>>, vector<1x8x8x16xf32>
    %1 = vector.shape_cast %0 : vector<1x8x8x16xf32> to vector<64x16xf32>
    %c0_3 = arith.constant 0 : index
    %c0_4 = arith.constant 0 : index
    %2 = vector.load %arg8[%c0_3, %c0_4] : memref<64x64xf32, #tpu.memory_space<vmem>>, vector<64x16xf32>
    tpu.vector_store %arg8[%c0_3, %c0_4], %1 {strides = array<i32>} : memref<64x64xf32, #tpu.memory_space<vmem>>, vector<64x16xf32>,
    %c0_5 = arith.constant 0 : index
    %c0_6 = arith.constant 0 : index
    %c1 = arith.constant 1 : index
    %c0_7 = arith.constant 0 : index
    %3 = vector.load %arg1[%c0_5, %c0_6, %c1, %c0_7] : memref<1x9x9x16xf32, #tpu.memory_space<vmem>>, vector<1x8x8x16xf32>
    %4 = vector.shape_cast %3 : vector<1x8x8x16xf32> to vector<64x16xf32>
    %c0_8 = arith.constant 0 : index
    %c16 = arith.constant 16 : index
    %5 = vector.load %arg8[%c0_8, %c16] : memref<64x64xf32, #tpu.memory_space<vmem>>, vector<64x16xf32>
    tpu.vector_store %arg8[%c0_8, %c16], %4 {strides = array<i32>} : memref<64x64xf32, #tpu.memory_space<vmem>>, vector<64x16xf32>,
    %c0_9 = arith.constant 0 : index
    %c1_10 = arith.constant 1 : index
    %c0_11 = arith.constant 0 : index
    %c0_12 = arith.constant 0 : index
    %6 = vector.load %arg1[%c0_9, %c1_10, %c0_11, %c0_12] : memref<1x9x9x16xf32, #tpu.memory_space<vmem>>, vector<1x8x8x16xf32>
    %7 = vector.shape_cast %6 : vector<1x8x8x16xf32> to vector<64x16xf32>
    %c0_13 = arith.constant 0 : index
    %c32 = arith.constant 32 : index
    %8 = vector.load %arg8[%c0_13, %c32] : memref<64x64xf32, #tpu.memory_space<vmem>>, vector<64x16xf32>
    tpu.vector_store %arg8[%c0_13, %c32], %7 {strides = array<i32>} : memref<64x64xf32, #tpu.memory_space<vmem>>, vector<64x16xf32>,
    %c0_14 = arith.constant 0 : index
    %c1_15 = arith.constant 1 : index
    %c1_16 = arith.constant 1 : index
    %c0_17 = arith.constant 0 : index
    %9 = vector.load %arg1[%c0_14, %c1_15, %c1_16, %c0_17] : memref<1x9x9x16xf32, #tpu.memory_space<vmem>>, vector<1x8x8x16xf32>
    %10 = vector.shape_cast %9 : vector<1x8x8x16xf32> to vector<64x16xf32>
    %c0_18 = arith.constant 0 : index
    %c48 = arith.constant 48 : index
    %11 = vector.load %arg8[%c0_18, %c48] : memref<64x64xf32, #tpu.memory_space<vmem>>, vector<64x16xf32>
    tpu.vector_store %arg8[%c0_18, %c48], %10 {strides = array<i32>} : memref<64x64xf32, #tpu.memory_space<vmem>>, vector<64x16xf32>,
    %c0_19 = arith.constant 0 : index
    %c0_20 = arith.constant 0 : index
    %12 = vector.load %arg8[%c0_19, %c0_20] : memref<64x64xf32, #tpu.memory_space<vmem>>, vector<64x64xf32>
    %c0_21 = arith.constant 0 : index
    %c0_22 = arith.constant 0 : index
    %13 = vector.load %arg2[%c0_21, %c0_22] : memref<64x8xf32, #tpu.memory_space<vmem>>, vector<64x8xf32>
    %cst = arith.constant dense<0.000000e+00> : vector<64x8xf32>
    %14 = tpu.matmul %12, %13, %cst {dimension_numbers = #tpu.dot_dimension_numbers<[1], [0], [0], [1], [0, 0, 1, 1], [], []>} : vector<64x64xf32>, vector<64x8xf32>, vector<64x8xf32> -> vector<64x8xf32>
    %c0_23 = arith.constant 0 : index
    %c0_24 = arith.constant 0 : index
    %15 = vector.load %arg5[%c0_23, %c0_24] : memref<1x8xf32, #tpu.memory_space<vmem>>, vector<1x8xf32>
    %16 = vector.broadcast %15 : vector<1x8xf32> to vector<64x8xf32>
    %17 = arith.addf %14, %16 : vector<64x8xf32>
    %cst_25 = arith.constant 0.000000e+00 : f32
    %18 = vector.broadcast %cst_25 : f32 to vector<64x8xf32>
    %19 = arith.maximumf %17, %18 : vector<64x8xf32>
    %c0_26 = arith.constant 0 : index
    %c0_27 = arith.constant 0 : index
    %20 = vector.load %arg3[%c0_26, %c0_27] : memref<64x8xf32, #tpu.memory_space<vmem>>, vector<64x8xf32>
    %cst_28 = arith.constant dense<0.000000e+00> : vector<64x8xf32>
    %21 = tpu.matmul %12, %20, %cst_28 {dimension_numbers = #tpu.dot_dimension_numbers<[1], [0], [0], [1], [0, 0, 1, 1], [], []>} : vector<64x64xf32>, vector<64x8xf32>, vector<64x8xf32> -> vector<64x8xf32>
    %cst_29 = arith.constant 0.000000e+00 : f32
    %22 = vector.broadcast %cst_29 : f32 to vector<1x1x10x8xf32>
    %cst_30 = arith.constant 0.000000e+00 : f32
    %23 = vector.broadcast %cst_30 : f32 to vector<1x10x1x8xf32>
    %c0_31 = arith.constant 0 : index
    %c0_32 = arith.constant 0 : index
    %c0_33 = arith.constant 0 : index
    %c0_34 = arith.constant 0 : index
    %24 = vector.load %arg9[%c0_31, %c0_32, %c0_33, %c0_34] : memref<1x10x10x8xf32, #tpu.memory_space<vmem>>, vector<1x1x10x8xf32>
    tpu.vector_store %arg9[%c0_31, %c0_32, %c0_33, %c0_34], %22 {strides = array<i32>} : memref<1x10x10x8xf32, #tpu.memory_space<vmem>>, vector<1x1x10x8xf32>,
    %c0_35 = arith.constant 0 : index
    %c9 = arith.constant 9 : index
    %c0_36 = arith.constant 0 : index
    %c0_37 = arith.constant 0 : index
    %25 = vector.load %arg9[%c0_35, %c9, %c0_36, %c0_37] : memref<1x10x10x8xf32, #tpu.memory_space<vmem>>, vector<1x1x10x8xf32>
    tpu.vector_store %arg9[%c0_35, %c9, %c0_36, %c0_37], %22 {strides = array<i32>} : memref<1x10x10x8xf32, #tpu.memory_space<vmem>>, vector<1x1x10x8xf32>,
    %c0_38 = arith.constant 0 : index
    %c0_39 = arith.constant 0 : index
    %c0_40 = arith.constant 0 : index
    %c0_41 = arith.constant 0 : index
    %26 = vector.load %arg9[%c0_38, %c0_39, %c0_40, %c0_41] : memref<1x10x10x8xf32, #tpu.memory_space<vmem>>, vector<1x10x1x8xf32>
    tpu.vector_store %arg9[%c0_38, %c0_39, %c0_40, %c0_41], %23 {strides = array<i32>} : memref<1x10x10x8xf32, #tpu.memory_space<vmem>>, vector<1x10x1x8xf32>,
    %c0_42 = arith.constant 0 : index
    %c0_43 = arith.constant 0 : index
    %c9_44 = arith.constant 9 : index
    %c0_45 = arith.constant 0 : index
    %27 = vector.load %arg9[%c0_42, %c0_43, %c9_44, %c0_45] : memref<1x10x10x8xf32, #tpu.memory_space<vmem>>, vector<1x10x1x8xf32>
    tpu.vector_store %arg9[%c0_42, %c0_43, %c9_44, %c0_45], %23 {strides = array<i32>} : memref<1x10x10x8xf32, #tpu.memory_space<vmem>>, vector<1x10x1x8xf32>,
    %28 = vector.shape_cast %19 : vector<64x8xf32> to vector<1x8x8x8xf32>
    %c0_46 = arith.constant 0 : index
    %c1_47 = arith.constant 1 : index
    %c1_48 = arith.constant 1 : index
    %c0_49 = arith.constant 0 : index
    %29 = vector.load %arg9[%c0_46, %c1_47, %c1_48, %c0_49] : memref<1x10x10x8xf32, #tpu.memory_space<vmem>>, vector<1x8x8x8xf32>
    tpu.vector_store %arg9[%c0_46, %c1_47, %c1_48, %c0_49], %28 {strides = array<i32>} : memref<1x10x10x8xf32, #tpu.memory_space<vmem>>, vector<1x8x8x8xf32>,
    %c0_50 = arith.constant 0 : index
    %c0_51 = arith.constant 0 : index
    %c0_52 = arith.constant 0 : index
    %c0_53 = arith.constant 0 : index
    %30 = vector.load %arg9[%c0_50, %c0_51, %c0_52, %c0_53] : memref<1x10x10x8xf32, #tpu.memory_space<vmem>>, vector<1x8x8x8xf32>
    %31 = vector.shape_cast %30 : vector<1x8x8x8xf32> to vector<64x8xf32>
    %c0_54 = arith.constant 0 : index
    %c0_55 = arith.constant 0 : index
    %32 = vector.load %arg10[%c0_54, %c0_55] : memref<64x72xf32, #tpu.memory_space<vmem>>, vector<64x8xf32>
    tpu.vector_store %arg10[%c0_54, %c0_55], %31 {strides = array<i32>} : memref<64x72xf32, #tpu.memory_space<vmem>>, vector<64x8xf32>,
    %c0_56 = arith.constant 0 : index
    %c0_57 = arith.constant 0 : index
    %c1_58 = arith.constant 1 : index
    %c0_59 = arith.constant 0 : index
    %33 = vector.load %arg9[%c0_56, %c0_57, %c1_58, %c0_59] : memref<1x10x10x8xf32, #tpu.memory_space<vmem>>, vector<1x8x8x8xf32>
    %34 = vector.shape_cast %33 : vector<1x8x8x8xf32> to vector<64x8xf32>
    %c0_60 = arith.constant 0 : index
    %c8 = arith.constant 8 : index
    %35 = vector.load %arg10[%c0_60, %c8] : memref<64x72xf32, #tpu.memory_space<vmem>>, vector<64x8xf32>
    tpu.vector_store %arg10[%c0_60, %c8], %34 {strides = array<i32>} : memref<64x72xf32, #tpu.memory_space<vmem>>, vector<64x8xf32>,
    %c0_61 = arith.constant 0 : index
    %c0_62 = arith.constant 0 : index
    %c2 = arith.constant 2 : index
    %c0_63 = arith.constant 0 : index
    %36 = vector.load %arg9[%c0_61, %c0_62, %c2, %c0_63] : memref<1x10x10x8xf32, #tpu.memory_space<vmem>>, vector<1x8x8x8xf32>
    %37 = vector.shape_cast %36 : vector<1x8x8x8xf32> to vector<64x8xf32>
    %c0_64 = arith.constant 0 : index
    %c16_65 = arith.constant 16 : index
    %38 = vector.load %arg10[%c0_64, %c16_65] : memref<64x72xf32, #tpu.memory_space<vmem>>, vector<64x8xf32>
    tpu.vector_store %arg10[%c0_64, %c16_65], %37 {strides = array<i32>} : memref<64x72xf32, #tpu.memory_space<vmem>>, vector<64x8xf32>,
    %c0_66 = arith.constant 0 : index
    %c1_67 = arith.constant 1 : index
    %c0_68 = arith.constant 0 : index
    %c0_69 = arith.constant 0 : index
    %39 = vector.load %arg9[%c0_66, %c1_67, %c0_68, %c0_69] : memref<1x10x10x8xf32, #tpu.memory_space<vmem>>, vector<1x8x8x8xf32>
    %40 = vector.shape_cast %39 : vector<1x8x8x8xf32> to vector<64x8xf32>
    %c0_70 = arith.constant 0 : index
    %c24 = arith.constant 24 : index
    %41 = vector.load %arg10[%c0_70, %c24] : memref<64x72xf32, #tpu.memory_space<vmem>>, vector<64x8xf32>
    tpu.vector_store %arg10[%c0_70, %c24], %40 {strides = array<i32>} : memref<64x72xf32, #tpu.memory_space<vmem>>, vector<64x8xf32>,
    %c0_71 = arith.constant 0 : index
    %c1_72 = arith.constant 1 : index
    %c1_73 = arith.constant 1 : index
    %c0_74 = arith.constant 0 : index
    %42 = vector.load %arg9[%c0_71, %c1_72, %c1_73, %c0_74] : memref<1x10x10x8xf32, #tpu.memory_space<vmem>>, vector<1x8x8x8xf32>
    %43 = vector.shape_cast %42 : vector<1x8x8x8xf32> to vector<64x8xf32>
    %c0_75 = arith.constant 0 : index
    %c32_76 = arith.constant 32 : index
    %44 = vector.load %arg10[%c0_75, %c32_76] : memref<64x72xf32, #tpu.memory_space<vmem>>, vector<64x8xf32>
    tpu.vector_store %arg10[%c0_75, %c32_76], %43 {strides = array<i32>} : memref<64x72xf32, #tpu.memory_space<vmem>>, vector<64x8xf32>,
    %c0_77 = arith.constant 0 : index
    %c1_78 = arith.constant 1 : index
    %c2_79 = arith.constant 2 : index
    %c0_80 = arith.constant 0 : index
    %45 = vector.load %arg9[%c0_77, %c1_78, %c2_79, %c0_80] : memref<1x10x10x8xf32, #tpu.memory_space<vmem>>, vector<1x8x8x8xf32>
    %46 = vector.shape_cast %45 : vector<1x8x8x8xf32> to vector<64x8xf32>
    %c0_81 = arith.constant 0 : index
    %c40 = arith.constant 40 : index
    %47 = vector.load %arg10[%c0_81, %c40] : memref<64x72xf32, #tpu.memory_space<vmem>>, vector<64x8xf32>
    tpu.vector_store %arg10[%c0_81, %c40], %46 {strides = array<i32>} : memref<64x72xf32, #tpu.memory_space<vmem>>, vector<64x8xf32>,
    %c0_82 = arith.constant 0 : index
    %c2_83 = arith.constant 2 : index
    %c0_84 = arith.constant 0 : index
    %c0_85 = arith.constant 0 : index
    %48 = vector.load %arg9[%c0_82, %c2_83, %c0_84, %c0_85] : memref<1x10x10x8xf32, #tpu.memory_space<vmem>>, vector<1x8x8x8xf32>
    %49 = vector.shape_cast %48 : vector<1x8x8x8xf32> to vector<64x8xf32>
    %c0_86 = arith.constant 0 : index
    %c48_87 = arith.constant 48 : index
    %50 = vector.load %arg10[%c0_86, %c48_87] : memref<64x72xf32, #tpu.memory_space<vmem>>, vector<64x8xf32>
    tpu.vector_store %arg10[%c0_86, %c48_87], %49 {strides = array<i32>} : memref<64x72xf32, #tpu.memory_space<vmem>>, vector<64x8xf32>,
    %c0_88 = arith.constant 0 : index
    %c2_89 = arith.constant 2 : index
    %c1_90 = arith.constant 1 : index
    %c0_91 = arith.constant 0 : index
    %51 = vector.load %arg9[%c0_88, %c2_89, %c1_90, %c0_91] : memref<1x10x10x8xf32, #tpu.memory_space<vmem>>, vector<1x8x8x8xf32>
    %52 = vector.shape_cast %51 : vector<1x8x8x8xf32> to vector<64x8xf32>
    %c0_92 = arith.constant 0 : index
    %c56 = arith.constant 56 : index
    %53 = vector.load %arg10[%c0_92, %c56] : memref<64x72xf32, #tpu.memory_space<vmem>>, vector<64x8xf32>
    tpu.vector_store %arg10[%c0_92, %c56], %52 {strides = array<i32>} : memref<64x72xf32, #tpu.memory_space<vmem>>, vector<64x8xf32>,
    %c0_93 = arith.constant 0 : index
    %c2_94 = arith.constant 2 : index
    %c2_95 = arith.constant 2 : index
    %c0_96 = arith.constant 0 : index
    %54 = vector.load %arg9[%c0_93, %c2_94, %c2_95, %c0_96] : memref<1x10x10x8xf32, #tpu.memory_space<vmem>>, vector<1x8x8x8xf32>
    %55 = vector.shape_cast %54 : vector<1x8x8x8xf32> to vector<64x8xf32>
    %c0_97 = arith.constant 0 : index
    %c64 = arith.constant 64 : index
    %56 = vector.load %arg10[%c0_97, %c64] : memref<64x72xf32, #tpu.memory_space<vmem>>, vector<64x8xf32>
    tpu.vector_store %arg10[%c0_97, %c64], %55 {strides = array<i32>} : memref<64x72xf32, #tpu.memory_space<vmem>>, vector<64x8xf32>,
    %c0_98 = arith.constant 0 : index
    %c0_99 = arith.constant 0 : index
    %57 = vector.load %arg10[%c0_98, %c0_99] : memref<64x72xf32, #tpu.memory_space<vmem>>, vector<64x72xf32>
    %c0_100 = arith.constant 0 : index
    %c0_101 = arith.constant 0 : index
    %58 = vector.load %arg4[%c0_100, %c0_101] : memref<72x8xf32, #tpu.memory_space<vmem>>, vector<72x8xf32>
    %cst_102 = arith.constant dense<0.000000e+00> : vector<64x8xf32>
    %59 = tpu.matmul %57, %58, %cst_102 {dimension_numbers = #tpu.dot_dimension_numbers<[1], [0], [0], [1], [0, 0, 1, 1], [], []>} : vector<64x72xf32>, vector<72x8xf32>, vector<64x8xf32> -> vector<64x8xf32>
    %60 = arith.addf %21, %59 : vector<64x8xf32>
    %c0_103 = arith.constant 0 : index
    %c0_104 = arith.constant 0 : index
    %61 = vector.load %arg6[%c0_103, %c0_104] : memref<1x8xf32, #tpu.memory_space<vmem>>, vector<1x8xf32>
    %62 = vector.broadcast %61 : vector<1x8xf32> to vector<64x8xf32>
    %63 = arith.addf %60, %62 : vector<64x8xf32>
    %cst_105 = arith.constant 0.000000e+00 : f32
    %64 = vector.broadcast %cst_105 : f32 to vector<64x8xf32>
    %65 = arith.maximumf %63, %64 : vector<64x8xf32>
    %66 = vector.shape_cast %65 : vector<64x8xf32> to vector<1x8x8x8xf32>
    %c0_106 = arith.constant 0 : index
    %c0_107 = arith.constant 0 : index
    %c0_108 = arith.constant 0 : index
    %c0_109 = arith.constant 0 : index
    %67 = vector.load %arg7[%c0_106, %c0_107, %c0_108, %c0_109] : memref<1x8x8x8xf32, #tpu.memory_space<vmem>>, vector<1x8x8x8xf32>
    tpu.vector_store %arg7[%c0_106, %c0_107, %c0_108, %c0_109], %66 {strides = array<i32>} : memref<1x8x8x8xf32, #tpu.memory_space<vmem>>, vector<1x8x8x8xf32>,
    return
  }
  func.func @transform_0(%arg0: i32) -> (i32, i32, i32, i32) {
    %c0_i32 = arith.constant 0 : i32
    %c0_i32_0 = arith.constant 0 : i32
    %c0_i32_1 = arith.constant 0 : i32
    %c0_i32_2 = arith.constant 0 : i32
    return %arg0, %c0_i32, %c0_i32_0, %c0_i32_1 : i32, i32, i32, i32
  }
  func.func @transform_1(%arg0: i32) -> (i32, i32) {
    %c0_i32 = arith.constant 0 : i32
    %c0_i32_0 = arith.constant 0 : i32
    %c0_i32_1 = arith.constant 0 : i32
    return %c0_i32, %c0_i32_0 : i32, i32
  }
  func.func @transform_2(%arg0: i32) -> (i32, i32) {
    %c0_i32 = arith.constant 0 : i32
    %c0_i32_0 = arith.constant 0 : i32
    %c0_i32_1 = arith.constant 0 : i32
    return %c0_i32, %c0_i32_0 : i32, i32
  }
  func.func @transform_3(%arg0: i32) -> (i32, i32) {
    %c0_i32 = arith.constant 0 : i32
    %c0_i32_0 = arith.constant 0 : i32
    %c0_i32_1 = arith.constant 0 : i32
    return %c0_i32, %c0_i32_0 : i32, i32
  }
  func.func @transform_4(%arg0: i32) -> (i32, i32) {
    %c0_i32 = arith.constant 0 : i32
    %c0_i32_0 = arith.constant 0 : i32
    %c0_i32_1 = arith.constant 0 : i32
    return %c0_i32, %c0_i32_0 : i32, i32
  }
  func.func @transform_5(%arg0: i32) -> (i32, i32) {
    %c0_i32 = arith.constant 0 : i32
    %c0_i32_0 = arith.constant 0 : i32
    %c0_i32_1 = arith.constant 0 : i32
    return %c0_i32, %c0_i32_0 : i32, i32
  }
  func.func @transform_6(%arg0: i32) -> (i32, i32, i32, i32) {
    %c0_i32 = arith.constant 0 : i32
    %c0_i32_0 = arith.constant 0 : i32
    %c0_i32_1 = arith.constant 0 : i32
    %c0_i32_2 = arith.constant 0 : i32
    return %arg0, %c0_i32, %c0_i32_0, %c0_i32_1 : i32, i32, i32, i32
  }
}

</mosaic_0001>

<llo_original>
// kernel: _lambda_.1
$region0: #{_lambda_.1}
  #allocation0 [shape = 'u32[]', space=smem, size = 0x4, offset = 0x4, fixed_abs, tag = 'smem constant byte address 0x4 - core index']
  #allocation1 [shape = 'u32[72,128]{1,0:T(1,128)}', space=vmem, size = 0x9000, scoped, tag = 'internal scratch']
  #allocation2 [shape = 'f32[64,64]{1,0:T(8,128)}', space=vmem, size = 0x8000, scoped, tag = 'scratch operand']
  #allocation3 [shape = 'f32[1,10,10,8]{3,2,1,0:T(8,128)}', space=vmem, size = 0x14000, scoped, tag = 'scratch operand']
  #allocation4 [shape = 'f32[64,72]{1,0:T(8,128)}', space=vmem, size = 0x8000, scoped, tag = 'scratch operand']
  %s0 = inlined_call_operand.vmem [shape: f32[2,9,9,16], index: 0, kind: input, shape index: {}]
  %s1 = inlined_call_operand.vmem [shape: f32[64,8], index: 1, kind: input, shape index: {}]
  %s2 = inlined_call_operand.vmem [shape: f32[64,8], index: 2, kind: input, shape index: {}]
  %s3 = inlined_call_operand.vmem [shape: f32[72,8], index: 3, kind: input, shape index: {}]
  %s4 = inlined_call_operand.vmem [shape: f32[1,8], index: 4, kind: input, shape index: {}]
  %s5 = inlined_call_operand.vmem [shape: f32[1,8], index: 5, kind: input, shape index: {}]
  %s6 = inlined_call_operand.hbm [shape: f32[2,8,8,8], index: 6, kind: output, shape index: {}]
  %s7 = sld [smem:[#allocation0]]
  $region57: #{_lambda_.1} parent=0
    _
  %s9 = ssub.s32 1, %s7
  %s10 = scalar_select 0, %s9, %s7
  $region1: #{_lambda_.1} parent=0
    #allocation5 [shape = 'u8[65536]{0}', space=vmem, size = 0x10000, scoped, tag = 'output window, operand 0']
    #allocation6 [shape = 's32[2]{0}', space=sflag, size = 0x8, scoped, tag = 'scoped memory for _lambda_.1']
    %11 = vsyncpa [#allocation6], 0
    %s12 = scalar_lea.sflag [#allocation6], 1
    %13 = vsyncpa %s12, 0
    loop: start=0, step=1, limit=4
    $region2: #{_lambda_.1} parent=1 // loop_pre_header
      _
    $region3: #{_lambda_.1} parent=1 // loop_header
      %s15 = sphi 0, %s19
      %p16 = scmp.ge.s32.totalorder %s15, 4
      %s25 = sphi 0, %s27
      %s28 = sphi 0, %s25
      %s29 = sphi 0, %s28
      %s45 = sphi 0, %s29
      %s49 = sphi 0, %s49
      %s51 = sphi 0, %s49
      %s52 = sphi 0, %s51
      %s66 = sphi 0, %s52
      %s70 = sphi 0, %s70
      %s72 = sphi 0, %s70
      %s73 = sphi 0, %s72
      %s87 = sphi 0, %s73
      %s91 = sphi 0, %s91
      %s93 = sphi 0, %s91
      %s94 = sphi 0, %s93
      %s108 = sphi 0, %s94
      %s112 = sphi 0, %s112
      %s114 = sphi 0, %s112
      %s115 = sphi 0, %s114
      %s129 = sphi 0, %s115
      %s133 = sphi 0, %s133
      %s135 = sphi 0, %s133
      %s136 = sphi 0, %s135
      %s150 = sphi 0, %s136
      %s156 = sphi 0, %s158
      %s159 = sphi 0, %s156
      %s160 = sphi 0, %s159
      %s176 = sphi 0, %s160
    $region4: #{_lambda_.1} parent=1 // loop_header_branch
      %18 = sbr.rel (%p16) target = $region8
    $region5: #{_lambda_.1} parent=1 // loop_body
      %s20 = ssub.s32 %s15, 1
      %s21 = ssub.s32 %s15, 2
      %s22 = sadd.s32 %s15, 1
      %s23 = ssub.s32 %s15, %s22
      %p24 = scmp.eq.s32.totalorder %s23, 0
      %s26 = sadd.s32 %s25, 1
      %s27 = scalar_select %p24, %s25, %s26
      %p30 = pneg %p24
      %p31 = scmp.eq.s32.totalorder %s15, 1
      %p32 = por %p30, %p31
      %p33 = scmp.ne.s32.totalorder %s25, %s28
      %p34 = scmp.eq.s32.totalorder %s15, 0
      %p35 = por %p33, %p34
      %p36 = scmp.ne.s32.totalorder %s25, %s28
      %p37 = scmp.eq.s32.totalorder %s20, 1
      %p38 = por %p36, %p37
      %p39 = scmp.ne.s32.totalorder %s28, %s29
      %p40 = scmp.eq.s32.totalorder %s20, 0
      %p41 = por %p39, %p40
      %p42 = scmp.ne.s32.totalorder %s28, %s29
      %p43 = scmp.eq.s32.totalorder %s21, 1
      %p44 = por %p42, %p43
      %p46 = scmp.ne.s32.totalorder %s29, %s45
      %p47 = scmp.eq.s32.totalorder %s21, 0
      %p48 = por %p46, %p47
      %s50 = sadd.s32 %s49, 1
      %p53 = scmp.eq.s32.totalorder %s15, 1
      %p54 = scmp.ne.s32.totalorder %s49, %s51
      %p55 = scmp.eq.s32.totalorder %s15, 0
      %p56 = por %p54, %p55
      %p57 = scmp.ne.s32.totalorder %s49, %s51
      %p58 = scmp.eq.s32.totalorder %s20, 1
      %p59 = por %p57, %p58
      %p60 = scmp.ne.s32.totalorder %s51, %s52
      %p61 = scmp.eq.s32.totalorder %s20, 0
      %p62 = por %p60, %p61
      %p63 = scmp.ne.s32.totalorder %s51, %s52
      %p64 = scmp.eq.s32.totalorder %s21, 1
      %p65 = por %p63, %p64
      %p67 = scmp.ne.s32.totalorder %s52, %s66
      %p68 = scmp.eq.s32.totalorder %s21, 0
      %p69 = por %p67, %p68
      %s71 = sadd.s32 %s70, 1
      %p74 = scmp.eq.s32.totalorder %s15, 1
      %p75 = scmp.ne.s32.totalorder %s70, %s72
      %p76 = scmp.eq.s32.totalorder %s15, 0
      %p77 = por %p75, %p76
      %p78 = scmp.ne.s32.totalorder %s70, %s72
      %p79 = scmp.eq.s32.totalorder %s20, 1
      %p80 = por %p78, %p79
      %p81 = scmp.ne.s32.totalorder %s72, %s73
      %p82 = scmp.eq.s32.totalorder %s20, 0
      %p83 = por %p81, %p82
      %p84 = scmp.ne.s32.totalorder %s72, %s73
      %p85 = scmp.eq.s32.totalorder %s21, 1
      %p86 = por %p84, %p85
      %p88 = scmp.ne.s32.totalorder %s73, %s87
      %p89 = scmp.eq.s32.totalorder %s21, 0
      %p90 = por %p88, %p89
      %s92 = sadd.s32 %s91, 1
      %p95 = scmp.eq.s32.totalorder %s15, 1
      %p96 = scmp.ne.s32.totalorder %s91, %s93
      %p97 = scmp.eq.s32.totalorder %s15, 0
      %p98 = por %p96, %p97
      %p99 = scmp.ne.s32.totalorder %s91, %s93
      %p100 = scmp.eq.s32.totalorder %s20, 1
      %p101 = por %p99, %p100
      %p102 = scmp.ne.s32.totalorder %s93, %s94
      %p103 = scmp.eq.s32.totalorder %s20, 0
      %p104 = por %p102, %p103
      %p105 = scmp.ne.s32.totalorder %s93, %s94
      %p106 = scmp.eq.s32.totalorder %s21, 1
      %p107 = por %p105, %p106
      %p109 = scmp.ne.s32.totalorder %s94, %s108
      %p110 = scmp.eq.s32.totalorder %s21, 0
      %p111 = por %p109, %p110
      %s113 = sadd.s32 %s112, 1
      %p116 = scmp.eq.s32.totalorder %s15, 1
      %p117 = scmp.ne.s32.totalorder %s112, %s114
      %p118 = scmp.eq.s32.totalorder %s15, 0
      %p119 = por %p117, %p118
      %p120 = scmp.ne.s32.totalorder %s112, %s114
      %p121 = scmp.eq.s32.totalorder %s20, 1
      %p122 = por %p120, %p121
      %p123 = scmp.ne.s32.totalorder %s114, %s115
      %p124 = scmp.eq.s32.totalorder %s20, 0
      %p125 = por %p123, %p124
      %p126 = scmp.ne.s32.totalorder %s114, %s115
      %p127 = scmp.eq.s32.totalorder %s21, 1
      %p128 = por %p126, %p127
      %p130 = scmp.ne.s32.totalorder %s115, %s129
      %p131 = scmp.eq.s32.totalorder %s21, 0
      %p132 = por %p130, %p131
      %s134 = sadd.s32 %s133, 1
      %p137 = scmp.eq.s32.totalorder %s15, 1
      %p138 = scmp.ne.s32.totalorder %s133, %s135
      %p139 = scmp.eq.s32.totalorder %s15, 0
      %p140 = por %p138, %p139
      %p141 = scmp.ne.s32.totalorder %s133, %s135
      %p142 = scmp.eq.s32.totalorder %s20, 1
      %p143 = por %p141, %p142
      %p144 = scmp.ne.s32.totalorder %s135, %s136
      %p145 = scmp.eq.s32.totalorder %s20, 0
      %p146 = por %p144, %p145
      %p147 = scmp.ne.s32.totalorder %s135, %s136
      %p148 = scmp.eq.s32.totalorder %s21, 1
      %p149 = por %p147, %p148
      %p151 = scmp.ne.s32.totalorder %s136, %s150
      %p152 = scmp.eq.s32.totalorder %s21, 0
      %p153 = por %p151, %p152
      %s154 = ssub.s32 %s15, %s22
      %p155 = scmp.eq.s32.totalorder %s154, 0
      %s157 = sadd.s32 %s156, 1
      %s158 = scalar_select %p155, %s156, %s157
      %p161 = pneg %p155
      %p162 = scmp.eq.s32.totalorder %s15, 1
      %p163 = por %p161, %p162
      %p164 = scmp.ne.s32.totalorder %s156, %s159
      %p165 = scmp.eq.s32.totalorder %s15, 0
      %p166 = por %p164, %p165
      %p167 = scmp.ne.s32.totalorder %s156, %s159
      %p168 = scmp.eq.s32.totalorder %s20, 1
      %p169 = por %p167, %p168
      %p170 = scmp.ne.s32.totalorder %s159, %s160
      %p171 = scmp.eq.s32.totalorder %s20, 0
      %p172 = por %p170, %p171
      %p173 = scmp.ne.s32.totalorder %s159, %s160
      %p174 = scmp.eq.s32.totalorder %s21, 1
      %p175 = por %p173, %p174
      %p177 = scmp.ne.s32.totalorder %s160, %s176
      %p178 = scmp.eq.s32.totalorder %s21, 0
      %p179 = por %p177, %p178
      %p180 = scmp.le.s32.totalorder 1, %s15
      %p181 = scmp.lt.s32.totalorder %s15, 3
      %p182 = pnand %p180, %p181
      %p183 = pneg %p182
      // Predicated region
      $region9: #{_lambda_.1} parent=5 // pred_check
        _
      $region10: #{_lambda_.1} parent=5 // pred_check_branch
        %185 = sbr.rel (%p182) target = $region12
      $region11: #{_lambda_.1} parent=5 // pred_region
        %s186 = ssub.s32 %s15, 1
        // Predicated region
        $region13: #{_lambda_.1} parent=11 // pred_check
          %p187 = pneg %p62
        $region14: #{_lambda_.1} parent=11 // pred_check_branch
          %189 = sbr.rel (%p187) target = $region16
        $region15: #{_lambda_.1} parent=11 // pred_region
          _
        $region16: #{_lambda_.1} parent=11 // pred_fallthru
          _
        // Predicated region
        $region17: #{_lambda_.1} parent=11 // pred_check
          %p190 = pneg %p83
        $region18: #{_lambda_.1} parent=11 // pred_check_branch
          %192 = sbr.rel (%p190) target = $region20
        $region19: #{_lambda_.1} parent=11 // pred_region
          _
        $region20: #{_lambda_.1} parent=11 // pred_fallthru
          _
        // Predicated region
        $region21: #{_lambda_.1} parent=11 // pred_check
          %p193 = pneg %p104
        $region22: #{_lambda_.1} parent=11 // pred_check_branch
          %195 = sbr.rel (%p193) target = $region24
        $region23: #{_lambda_.1} parent=11 // pred_region
          _
        $region24: #{_lambda_.1} parent=11 // pred_fallthru
          _
        // Predicated region
        $region25: #{_lambda_.1} parent=11 // pred_check
          %p196 = pneg %p125
        $region26: #{_lambda_.1} parent=11 // pred_check_branch
          %198 = sbr.rel (%p196) target = $region28
        $region27: #{_lambda_.1} parent=11 // pred_region
          _
        $region28: #{_lambda_.1} parent=11 // pred_fallthru
          _
        // Predicated region
        $region29: #{_lambda_.1} parent=11 // pred_check
          %p199 = pneg %p146
        $region30: #{_lambda_.1} parent=11 // pred_check_branch
          %201 = sbr.rel (%p199) target = $region32
        $region31: #{_lambda_.1} parent=11 // pred_region
          _
        $region32: #{_lambda_.1} parent=11 // pred_fallthru
          _
      $region12: #{_lambda_.1} parent=5 // pred_fallthru
        _
      %p202 = scmp.lt.s32.totalorder %s15, 2
      // Predicated region
      $region33: #{_lambda_.1} parent=5 // pred_check
        %p203 = pneg %p202
      $region34: #{_lambda_.1} parent=5 // pred_check_branch
        %205 = sbr.rel (%p203) target = $region36
      $region35: #{_lambda_.1} parent=5 // pred_region
        // Predicated region
        $region37: #{_lambda_.1} parent=35 // pred_check
          %p206 = pneg %p35
        $region38: #{_lambda_.1} parent=35 // pred_check_branch
          %208 = sbr.rel (%p206) target = $region40
        $region39: #{_lambda_.1} parent=35 // pred_region
          %p209 = scmp.lt.s32.totalorder %s15, 1
          %s210 = scalar_select %p209, %s15, 1
          %s211 = smul.addr %s210, 18
          %s212 = smul.addr %s211, 8
          %s213 = scalar_lea.vmem %s0, %s212
        $region40: #{_lambda_.1} parent=35 // pred_fallthru
          _
      $region36: #{_lambda_.1} parent=5 // pred_fallthru
        _
      %p214 = scmp.le.s32.totalorder 1, %s15
      %p215 = scmp.lt.s32.totalorder %s15, 3
      %p216 = pnand %p214, %p215
      %p217 = pneg %p216
      // Predicated region
      $region41: #{_lambda_.1} parent=5 // pred_check
        _
      $region42: #{_lambda_.1} parent=5 // pred_check_branch
        %219 = sbr.rel (%p216) target = $region44
      $region43: #{_lambda_.1} parent=5 // pred_region
        %s220 = ssub.s32 %s15, 1
        %p221 = scmp.lt.s32.totalorder %s20, 1
        %s222 = scalar_select %p221, %s20, 1
        %s223 = smul.addr %s222, 18
        %s224 = smul.addr %s223, 8
        %s225 = scalar_lea.vmem %s0, %s224
        %p226 = pneg %p41
        %p227 = pneg %p38
        %p228 = pneg %p62
        %p229 = pneg %p59
        %p230 = pneg %p83
        %p231 = pneg %p80
        %p232 = pneg %p104
        %p233 = pneg %p101
        %p234 = pneg %p125
        %p235 = pneg %p122
        %p236 = pneg %p146
        %p237 = pneg %p143
        %p238 = pneg %p172
        %p239 = pneg %p169
        %s240 = sand.u32 %s159, 1
        %s241 = scalar_lea.sflag [#allocation6], %s240
        %s242 = sand.u32 %s159, 1
        %s243 = smul.addr %s242, 64
        %s244 = scalar_lea.vmem [#allocation5], %s243
        %p245 = scmp.lt.s32.totalorder %s20, 1
        %s246 = scalar_select %p245, %s20, 1
        %s247 = smul.addr %s246, 18
        %s248 = smul.addr %s247, 8
        %s249 = scalar_lea.vmem %s0, %s248
        %v250 = vld [vmem:[%s249] sm:$0xff]
        %v251 = vld [vmem:[%s249 + $0x10] sm:$0xff]
        %v252 = vld [vmem:[%s249 + $0x20] sm:$0xff]
        %v253 = vld [vmem:[%s249 + $0x30] sm:$0xff]
        %v254 = vld [vmem:[%s249 + $0x40] sm:$0xff]
        %v255 = vld [vmem:[%s249 + $0x50] sm:$0xff]
        %v256 = vld [vmem:[%s249 + $0x60] sm:$0xff]
        %v257 = vld [vmem:[%s249 + $0x70] sm:$0xff]
        %vm258 = vcmask 130048
        %259 = vst.msk [vmem:[#allocation2] sm:$0xff] %vm258, %v250
        %260 = vst.msk [vmem:[#allocation2 + $0x8] sm:$0xff] %vm258, %v251
        %261 = vst.msk [vmem:[#allocation2 + $0x10] sm:$0xff] %vm258, %v252
        %262 = vst.msk [vmem:[#allocation2 + $0x18] sm:$0xff] %vm258, %v253
        %263 = vst.msk [vmem:[#allocation2 + $0x20] sm:$0xff] %vm258, %v254
        %264 = vst.msk [vmem:[#allocation2 + $0x28] sm:$0xff] %vm258, %v255
        %265 = vst.msk [vmem:[#allocation2 + $0x30] sm:$0xff] %vm258, %v256
        %266 = vst.msk [vmem:[#allocation2 + $0x38] sm:$0xff] %vm258, %v257
        %v267 = vld [vmem:[%s249 + $0x1] sm:$0xff]
        %v268 = vld [vmem:[%s249 + $0x11] sm:$0xff]
        %v269 = vld [vmem:[%s249 + $0x21] sm:$0xff]
        %v270 = vld [vmem:[%s249 + $0x31] sm:$0xff]
        %v271 = vld [vmem:[%s249 + $0x41] sm:$0xff]
        %v272 = vld [vmem:[%s249 + $0x51] sm:$0xff]
        %v273 = vld [vmem:[%s249 + $0x61] sm:$0xff]
        %v274 = vld [vmem:[%s249 + $0x71] sm:$0xff]
        %283 = vrot.lane.b32.xlu0 %v267, 16
        %v284 = vpop.permute.xlu0 %283
        %285 = vrot.lane.b32.xlu0 %v268, 16
        %v286 = vpop.permute.xlu0 %285
        %287 = vrot.lane.b32.xlu0 %v269, 16
        %v288 = vpop.permute.xlu0 %287
        %289 = vrot.lane.b32.xlu0 %v270, 16
        %v290 = vpop.permute.xlu0 %289
        %291 = vrot.lane.b32.xlu0 %v271, 16
        %v292 = vpop.permute.xlu0 %291
        %293 = vrot.lane.b32.xlu0 %v272, 16
        %v294 = vpop.permute.xlu0 %293
        %295 = vrot.lane.b32.xlu0 %v273, 16
        %v296 = vpop.permute.xlu0 %295
        %297 = vrot.lane.b32.xlu0 %v274, 16
        %v298 = vpop.permute.xlu0 %297
        %vm307 = vcmask 261248
        %308 = vst.msk [vmem:[#allocation2] sm:$0xff] %vm307, %v284
        %309 = vst.msk [vmem:[#allocation2 + $0x8] sm:$0xff] %vm307, %v286
        %310 = vst.msk [vmem:[#allocation2 + $0x10] sm:$0xff] %vm307, %v288
        %311 = vst.msk [vmem:[#allocation2 + $0x18] sm:$0xff] %vm307, %v290
        %312 = vst.msk [vmem:[#allocation2 + $0x20] sm:$0xff] %vm307, %v292
        %313 = vst.msk [vmem:[#allocation2 + $0x28] sm:$0xff] %vm307, %v294
        %314 = vst.msk [vmem:[#allocation2 + $0x30] sm:$0xff] %vm307, %v296
        %315 = vst.msk [vmem:[#allocation2 + $0x38] sm:$0xff] %vm307, %v298
        %s316 = scalar_lea.vmem %s249, 16
        %v317 = vld [vmem:[%s316] sm:$0xff]
        %v318 = vld [vmem:[%s316 + $0x10] sm:$0xff]
        %v319 = vld [vmem:[%s316 + $0x20] sm:$0xff]
        %v320 = vld [vmem:[%s316 + $0x30] sm:$0xff]
        %v321 = vld [vmem:[%s316 + $0x40] sm:$0xff]
        %v322 = vld [vmem:[%s316 + $0x50] sm:$0xff]
        %v323 = vld [vmem:[%s316 + $0x60] sm:$0xff]
        %v324 = vld [vmem:[%s316 + $0x70] sm:$0xff]
        %333 = vrot.lane.b32.xlu0 %v317, 32
        %v334 = vpop.permute.xlu0 %333
        %335 = vrot.lane.b32.xlu0 %v318, 32
        %v336 = vpop.permute.xlu0 %335
        %337 = vrot.lane.b32.xlu0 %v319, 32
        %v338 = vpop.permute.xlu0 %337
        %339 = vrot.lane.b32.xlu0 %v320, 32
        %v340 = vpop.permute.xlu0 %339
        %341 = vrot.lane.b32.xlu0 %v321, 32
        %v342 = vpop.permute.xlu0 %341
        %343 = vrot.lane.b32.xlu0 %v322, 32
        %v344 = vpop.permute.xlu0 %343
        %345 = vrot.lane.b32.xlu0 %v323, 32
        %v346 = vpop.permute.xlu0 %345
        %347 = vrot.lane.b32.xlu0 %v324, 32
        %v348 = vpop.permute.xlu0 %347
        %vm357 = vcmask 392448
        %358 = vst.msk [vmem:[#allocation2] sm:$0xff] %vm357, %v334
        %359 = vst.msk [vmem:[#allocation2 + $0x8] sm:$0xff] %vm357, %v336
        %360 = vst.msk [vmem:[#allocation2 + $0x10] sm:$0xff] %vm357, %v338
        %361 = vst.msk [vmem:[#allocation2 + $0x18] sm:$0xff] %vm357, %v340
        %362 = vst.msk [vmem:[#allocation2 + $0x20] sm:$0xff] %vm357, %v342
        %363 = vst.msk [vmem:[#allocation2 + $0x28] sm:$0xff] %vm357, %v344
        %364 = vst.msk [vmem:[#allocation2 + $0x30] sm:$0xff] %vm357, %v346
        %365 = vst.msk [vmem:[#allocation2 + $0x38] sm:$0xff] %vm357, %v348
        %v366 = vld [vmem:[%s316 + $0x1] sm:$0xff]
        %v367 = vld [vmem:[%s316 + $0x11] sm:$0xff]
        %v368 = vld [vmem:[%s316 + $0x21] sm:$0xff]
        %v369 = vld [vmem:[%s316 + $0x31] sm:$0xff]
        %v370 = vld [vmem:[%s316 + $0x41] sm:$0xff]
        %v371 = vld [vmem:[%s316 + $0x51] sm:$0xff]
        %v372 = vld [vmem:[%s316 + $0x61] sm:$0xff]
        %v373 = vld [vmem:[%s316 + $0x71] sm:$0xff]
        %382 = vrot.lane.b32.xlu0 %v366, 48
        %v383 = vpop.permute.xlu0 %382
        %384 = vrot.lane.b32.xlu0 %v367, 48
        %v385 = vpop.permute.xlu0 %384
        %386 = vrot.lane.b32.xlu0 %v368, 48
        %v387 = vpop.permute.xlu0 %386
        %388 = vrot.lane.b32.xlu0 %v369, 48
        %v389 = vpop.permute.xlu0 %388
        %390 = vrot.lane.b32.xlu0 %v370, 48
        %v391 = vpop.permute.xlu0 %390
        %392 = vrot.lane.b32.xlu0 %v371, 48
        %v393 = vpop.permute.xlu0 %392
        %394 = vrot.lane.b32.xlu0 %v372, 48
        %v395 = vpop.permute.xlu0 %394
        %396 = vrot.lane.b32.xlu0 %v373, 48
        %v397 = vpop.permute.xlu0 %396
        %vm406 = vcmask 523648
        %407 = vst.msk [vmem:[#allocation2] sm:$0xff] %vm406, %v383
        %408 = vst.msk [vmem:[#allocation2 + $0x8] sm:$0xff] %vm406, %v385
        %409 = vst.msk [vmem:[#allocation2 + $0x10] sm:$0xff] %vm406, %v387
        %410 = vst.msk [vmem:[#allocation2 + $0x18] sm:$0xff] %vm406, %v389
        %411 = vst.msk [vmem:[#allocation2 + $0x20] sm:$0xff] %vm406, %v391
        %412 = vst.msk [vmem:[#allocation2 + $0x28] sm:$0xff] %vm406, %v393
        %413 = vst.msk [vmem:[#allocation2 + $0x30] sm:$0xff] %vm406, %v395
        %414 = vst.msk [vmem:[#allocation2 + $0x38] sm:$0xff] %vm406, %v397
        %v415 = vld [vmem:[#allocation2] sm:$0xff]
        %v416 = vld [vmem:[#allocation2 + $0x8] sm:$0xff]
        %v417 = vld [vmem:[#allocation2 + $0x10] sm:$0xff]
        %v418 = vld [vmem:[#allocation2 + $0x18] sm:$0xff]
        %v419 = vld [vmem:[#allocation2 + $0x20] sm:$0xff]
        %v420 = vld [vmem:[#allocation2 + $0x28] sm:$0xff]
        %v421 = vld [vmem:[#allocation2 + $0x30] sm:$0xff]
        %v422 = vld [vmem:[#allocation2 + $0x38] sm:$0xff]
        %v423 = vld [vmem:[%s1] sm:$0xff]
        %v424 = vld [vmem:[%s1 + $0x8] sm:$0xff]
        %v425 = vld [vmem:[%s1 + $0x10] sm:$0xff]
        %v426 = vld [vmem:[%s1 + $0x18] sm:$0xff]
        %v427 = vld [vmem:[%s1 + $0x20] sm:$0xff]
        %v428 = vld [vmem:[%s1 + $0x28] sm:$0xff]
        %v429 = vld [vmem:[%s1 + $0x30] sm:$0xff]
        %v430 = vld [vmem:[%s1 + $0x38] sm:$0xff]
        %v431 = vld [vmem:[%s4] sm:$0x1]
        %v433 = vperm.slane %v431, 0
        %vm435 = vcmask 523264
        %v437 = vsel %vm435, %v415, 0
        %v440 = vsel %vm435, %v416, 0
        %v443 = vsel %vm435, %v417, 0
        %v446 = vsel %vm435, %v418, 0
        %v449 = vsel %vm435, %v419, 0
        %v452 = vsel %vm435, %v420, 0
        %v455 = vsel %vm435, %v421, 0
        %v458 = vsel %vm435, %v422, 0
        %460 = vmatpush.msra.mxu0 0.0
        %461 = vmatpush.msra.mxu0 0.0
        %462 = vmatpush.msra.mxu0 0.0
        %463 = vmatpush.msra.mxu0 0.0
        %464 = vmatpush.msra.mxu0 0.0
        %465 = vmatpush.msra.mxu0 0.0
        %466 = vmatpush.msra.mxu0 0.0
        %467 = vmatpush.msra.mxu0 0.0
        %468 = vmatpush.msra.mxu0 %v430
        %469 = vmatpush.msra.mxu0 %v429
        %470 = vmatpush.msra.mxu0 %v428
        %471 = vmatpush.msra.mxu0 %v427
        %472 = vmatpush.msra.mxu0 %v426
        %473 = vmatpush.msra.mxu0 %v425
        %474 = vmatpush.msra.mxu0 %v424
        %475 = vmatpush.msra.mxu0 %v423
        %476 = vmatmul.f32.gmra.mxu0 %v437
        %v477 = vpop.f32.mrf.mxu0
        %v478 = vadd.f32 %v433, %v477
        %479 = vmatmul.f32.gmra.mxu0 %v440
        %v480 = vpop.f32.mrf.mxu0
        %v481 = vadd.f32 %v433, %v480
        %482 = vmatmul.f32.gmra.mxu0 %v443
        %v483 = vpop.f32.mrf.mxu0
        %v484 = vadd.f32 %v433, %v483
        %485 = vmatmul.f32.gmra.mxu0 %v446
        %v486 = vpop.f32.mrf.mxu0
        %v487 = vadd.f32 %v433, %v486
        %488 = vmatmul.f32.gmra.mxu0 %v449
        %v489 = vpop.f32.mrf.mxu0
        %v490 = vadd.f32 %v433, %v489
        %491 = vmatmul.f32.gmra.mxu0 %v452
        %v492 = vpop.f32.mrf.mxu0
        %v493 = vadd.f32 %v433, %v492
        %494 = vmatmul.f32.gmra.mxu0 %v455
        %v495 = vpop.f32.mrf.mxu0
        %v496 = vadd.f32 %v433, %v495
        %497 = vmatmul.f32.gmra.mxu0 %v458
        %v498 = vpop.f32.mrf.mxu0
        %v499 = vadd.f32 %v433, %v498
        %500 = vdwg.mxu0
        %v501 = vmax.f32 %v478, 0.0
        %v502 = vmax.f32 %v481, 0.0
        %v503 = vmax.f32 %v484, 0.0
        %v504 = vmax.f32 %v487, 0.0
        %v505 = vmax.f32 %v490, 0.0
        %v506 = vmax.f32 %v493, 0.0
        %v507 = vmax.f32 %v496, 0.0
        %v508 = vmax.f32 %v499, 0.0
        %v509 = vld [vmem:[%s2] sm:$0xff]
        %v510 = vld [vmem:[%s2 + $0x8] sm:$0xff]
        %v511 = vld [vmem:[%s2 + $0x10] sm:$0xff]
        %v512 = vld [vmem:[%s2 + $0x18] sm:$0xff]
        %v513 = vld [vmem:[%s2 + $0x20] sm:$0xff]
        %v514 = vld [vmem:[%s2 + $0x28] sm:$0xff]
        %v515 = vld [vmem:[%s2 + $0x30] sm:$0xff]
        %v516 = vld [vmem:[%s2 + $0x38] sm:$0xff]
        %vm517 = vcmask 64512
        %518 = vst.msk [vmem:[#allocation3] sm:$0xff] %vm517, 0.0
        %vm519 = vcmask 58368
        %520 = vst.msk [vmem:[#allocation3 + $0x8] sm:$0x3] %vm519, 0.0
        %s521 = scalar_lea.vmem [#allocation3], 144
        %522 = vst.msk [vmem:[%s521] sm:$0xff] %vm517, 0.0
        %523 = vst.msk [vmem:[%s521 + $0x8] sm:$0x3] %vm519, 0.0
        %vm524 = vcmask 57344
        %525 = vst.msk [vmem:[#allocation3] sm:$0x1] %vm524, 0.0
        %526 = vst.msk [vmem:[#allocation3 + $0x10] sm:$0x1] %vm524, 0.0
        %527 = vst.msk [vmem:[#allocation3 + $0x20] sm:$0x1] %vm524, 0.0
        %528 = vst.msk [vmem:[#allocation3 + $0x30] sm:$0x1] %vm524, 0.0
        %529 = vst.msk [vmem:[#allocation3 + $0x40] sm:$0x1] %vm524, 0.0
        %530 = vst.msk [vmem:[#allocation3 + $0x50] sm:$0x1] %vm524, 0.0
        %531 = vst.msk [vmem:[#allocation3 + $0x60] sm:$0x1] %vm524, 0.0
        %532 = vst.msk [vmem:[#allocation3 + $0x70] sm:$0x1] %vm524, 0.0
        %533 = vst.msk [vmem:[#allocation3 + $0x80] sm:$0x1] %vm524, 0.0
        %534 = vst.msk [vmem:[#allocation3 + $0x90] sm:$0x1] %vm524, 0.0
        %535 = vst.msk [vmem:[#allocation3 + $0x9] sm:$0x1] %vm524, 0.0
        %536 = vst.msk [vmem:[#allocation3 + $0x19] sm:$0x1] %vm524, 0.0
        %537 = vst.msk [vmem:[#allocation3 + $0x29] sm:$0x1] %vm524, 0.0
        %538 = vst.msk [vmem:[#allocation3 + $0x39] sm:$0x1] %vm524, 0.0
        %539 = vst.msk [vmem:[#allocation3 + $0x49] sm:$0x1] %vm524, 0.0
        %540 = vst.msk [vmem:[#allocation3 + $0x59] sm:$0x1] %vm524, 0.0
        %541 = vst.msk [vmem:[#allocation3 + $0x69] sm:$0x1] %vm524, 0.0
        %542 = vst.msk [vmem:[#allocation3 + $0x79] sm:$0x1] %vm524, 0.0
        %543 = vst.msk [vmem:[#allocation3 + $0x89] sm:$0x1] %vm524, 0.0
        %544 = vst.msk [vmem:[#allocation3 + $0x99] sm:$0x1] %vm524, 0.0
        %s545 = scalar_lea.vmem [#allocation3], 16
        %546 = vst.msk [vmem:[%s545 + $0x1] sm:$0xff] %vm517, %v501
        %547 = vst.msk [vmem:[%s545 + $0x11] sm:$0xff] %vm517, %v502
        %548 = vst.msk [vmem:[%s545 + $0x21] sm:$0xff] %vm517, %v503
        %549 = vst.msk [vmem:[%s545 + $0x31] sm:$0xff] %vm517, %v504
        %550 = vst.msk [vmem:[%s545 + $0x41] sm:$0xff] %vm517, %v505
        %551 = vst.msk [vmem:[%s545 + $0x51] sm:$0xff] %vm517, %v506
        %552 = vst.msk [vmem:[%s545 + $0x61] sm:$0xff] %vm517, %v507
        %553 = vst.msk [vmem:[%s545 + $0x71] sm:$0xff] %vm517, %v508
        %v554 = vld [vmem:[#allocation3] sm:$0xff]
        %v555 = vld [vmem:[#allocation3 + $0x10] sm:$0xff]
        %v556 = vld [vmem:[#allocation3 + $0x20] sm:$0xff]
        %v557 = vld [vmem:[#allocation3 + $0x30] sm:$0xff]
        %v558 = vld [vmem:[#allocation3 + $0x40] sm:$0xff]
        %v559 = vld [vmem:[#allocation3 + $0x50] sm:$0xff]
        %v560 = vld [vmem:[#allocation3 + $0x60] sm:$0xff]
        %v561 = vld [vmem:[#allocation3 + $0x70] sm:$0xff]
        %562 = vst.msk [vmem:[#allocation4] sm:$0xff] %vm517, %v554
        %563 = vst.msk [vmem:[#allocation4 + $0x8] sm:$0xff] %vm517, %v555
        %564 = vst.msk [vmem:[#allocation4 + $0x10] sm:$0xff] %vm517, %v556
        %565 = vst.msk [vmem:[#allocation4 + $0x18] sm:$0xff] %vm517, %v557
        %566 = vst.msk [vmem:[#allocation4 + $0x20] sm:$0xff] %vm517, %v558
        %567 = vst.msk [vmem:[#allocation4 + $0x28] sm:$0xff] %vm517, %v559
        %568 = vst.msk [vmem:[#allocation4 + $0x30] sm:$0xff] %vm517, %v560
        %569 = vst.msk [vmem:[#allocation4 + $0x38] sm:$0xff] %vm517, %v561
        %v570 = vld [vmem:[#allocation3 + $0x1] sm:$0xff]
        %v571 = vld [vmem:[#allocation3 + $0x11] sm:$0xff]
        %v572 = vld [vmem:[#allocation3 + $0x21] sm:$0xff]
        %v573 = vld [vmem:[#allocation3 + $0x31] sm:$0xff]
        %v574 = vld [vmem:[#allocation3 + $0x41] sm:$0xff]
        %v575 = vld [vmem:[#allocation3 + $0x51] sm:$0xff]
        %v576 = vld [vmem:[#allocation3 + $0x61] sm:$0xff]
        %v577 = vld [vmem:[#allocation3 + $0x71] sm:$0xff]
        %586 = vrot.lane.b32.xlu0 %v570, 8
        %v587 = vpop.permute.xlu0 %586
        %588 = vrot.lane.b32.xlu0 %v571, 8
        %v589 = vpop.permute.xlu0 %588
        %590 = vrot.lane.b32.xlu0 %v572, 8
        %v591 = vpop.permute.xlu0 %590
        %592 = vrot.lane.b32.xlu0 %v573, 8
        %v593 = vpop.permute.xlu0 %592
        %594 = vrot.lane.b32.xlu0 %v574, 8
        %v595 = vpop.permute.xlu0 %594
        %596 = vrot.lane.b32.xlu0 %v575, 8
        %v597 = vpop.permute.xlu0 %596
        %598 = vrot.lane.b32.xlu0 %v576, 8
        %v599 = vpop.permute.xlu0 %598
        %600 = vrot.lane.b32.xlu0 %v577, 8
        %v601 = vpop.permute.xlu0 %600
        %vm610 = vcmask 130112
        %611 = vst.msk [vmem:[#allocation4] sm:$0xff] %vm610, %v587
        %612 = vst.msk [vmem:[#allocation4 + $0x8] sm:$0xff] %vm610, %v589
        %613 = vst.msk [vmem:[#allocation4 + $0x10] sm:$0xff] %vm610, %v591
        %614 = vst.msk [vmem:[#allocation4 + $0x18] sm:$0xff] %vm610, %v593
        %615 = vst.msk [vmem:[#allocation4 + $0x20] sm:$0xff] %vm610, %v595
        %616 = vst.msk [vmem:[#allocation4 + $0x28] sm:$0xff] %vm610, %v597
        %617 = vst.msk [vmem:[#allocation4 + $0x30] sm:$0xff] %vm610, %v599
        %618 = vst.msk [vmem:[#allocation4 + $0x38] sm:$0xff] %vm610, %v601
        %v619 = vld [vmem:[#allocation3 + $0x2] sm:$0xff]
        %v620 = vld [vmem:[#allocation3 + $0x12] sm:$0xff]
        %v621 = vld [vmem:[#allocation3 + $0x22] sm:$0xff]
        %v622 = vld [vmem:[#allocation3 + $0x32] sm:$0xff]
        %v623 = vld [vmem:[#allocation3 + $0x42] sm:$0xff]
        %v624 = vld [vmem:[#allocation3 + $0x52] sm:$0xff]
        %v625 = vld [vmem:[#allocation3 + $0x62] sm:$0xff]
        %v626 = vld [vmem:[#allocation3 + $0x72] sm:$0xff]
        %635 = vrot.lane.b32.xlu0 %v619, 16
        %v636 = vpop.permute.xlu0 %635
        %637 = vrot.lane.b32.xlu0 %v620, 16
        %v638 = vpop.permute.xlu0 %637
        %639 = vrot.lane.b32.xlu0 %v621, 16
        %v640 = vpop.permute.xlu0 %639
        %641 = vrot.lane.b32.xlu0 %v622, 16
        %v642 = vpop.permute.xlu0 %641
        %643 = vrot.lane.b32.xlu0 %v623, 16
        %v644 = vpop.permute.xlu0 %643
        %645 = vrot.lane.b32.xlu0 %v624, 16
        %v646 = vpop.permute.xlu0 %645
        %647 = vrot.lane.b32.xlu0 %v625, 16
        %v648 = vpop.permute.xlu0 %647
        %649 = vrot.lane.b32.xlu0 %v626, 16
        %v650 = vpop.permute.xlu0 %649
        %vm659 = vcmask 195712
        %660 = vst.msk [vmem:[#allocation4] sm:$0xff] %vm659, %v636
        %661 = vst.msk [vmem:[#allocation4 + $0x8] sm:$0xff] %vm659, %v638
        %662 = vst.msk [vmem:[#allocation4 + $0x10] sm:$0xff] %vm659, %v640
        %663 = vst.msk [vmem:[#allocation4 + $0x18] sm:$0xff] %vm659, %v642
        %664 = vst.msk [vmem:[#allocation4 + $0x20] sm:$0xff] %vm659, %v644
        %665 = vst.msk [vmem:[#allocation4 + $0x28] sm:$0xff] %vm659, %v646
        %666 = vst.msk [vmem:[#allocation4 + $0x30] sm:$0xff] %vm659, %v648
        %667 = vst.msk [vmem:[#allocation4 + $0x38] sm:$0xff] %vm659, %v650
        %v668 = vld [vmem:[%s545] sm:$0xff]
        %v669 = vld [vmem:[%s545 + $0x10] sm:$0xff]
        %v670 = vld [vmem:[%s545 + $0x20] sm:$0xff]
        %v671 = vld [vmem:[%s545 + $0x30] sm:$0xff]
        %v672 = vld [vmem:[%s545 + $0x40] sm:$0xff]
        %v673 = vld [vmem:[%s545 + $0x50] sm:$0xff]
        %v674 = vld [vmem:[%s545 + $0x60] sm:$0xff]
        %v675 = vld [vmem:[%s545 + $0x70] sm:$0xff]
        %684 = vrot.lane.b32.xlu0 %v668, 24
        %v685 = vpop.permute.xlu0 %684
        %686 = vrot.lane.b32.xlu0 %v669, 24
        %v687 = vpop.permute.xlu0 %686
        %688 = vrot.lane.b32.xlu0 %v670, 24
        %v689 = vpop.permute.xlu0 %688
        %690 = vrot.lane.b32.xlu0 %v671, 24
        %v691 = vpop.permute.xlu0 %690
        %692 = vrot.lane.b32.xlu0 %v672, 24
        %v693 = vpop.permute.xlu0 %692
        %694 = vrot.lane.b32.xlu0 %v673, 24
        %v695 = vpop.permute.xlu0 %694
        %696 = vrot.lane.b32.xlu0 %v674, 24
        %v697 = vpop.permute.xlu0 %696
        %698 = vrot.lane.b32.xlu0 %v675, 24
        %v699 = vpop.permute.xlu0 %698
        %vm708 = vcmask 261312
        %709 = vst.msk [vmem:[#allocation4] sm:$0xff] %vm708, %v685
        %710 = vst.msk [vmem:[#allocation4 + $0x8] sm:$0xff] %vm708, %v687
        %711 = vst.msk [vmem:[#allocation4 + $0x10] sm:$0xff] %vm708, %v689
        %712 = vst.msk [vmem:[#allocation4 + $0x18] sm:$0xff] %vm708, %v691
        %713 = vst.msk [vmem:[#allocation4 + $0x20] sm:$0xff] %vm708, %v693
        %714 = vst.msk [vmem:[#allocation4 + $0x28] sm:$0xff] %vm708, %v695
        %715 = vst.msk [vmem:[#allocation4 + $0x30] sm:$0xff] %vm708, %v697
        %716 = vst.msk [vmem:[#allocation4 + $0x38] sm:$0xff] %vm708, %v699
        %v717 = vld [vmem:[%s545 + $0x1] sm:$0xff]
        %v718 = vld [vmem:[%s545 + $0x11] sm:$0xff]
        %v719 = vld [vmem:[%s545 + $0x21] sm:$0xff]
        %v720 = vld [vmem:[%s545 + $0x31] sm:$0xff]
        %v721 = vld [vmem:[%s545 + $0x41] sm:$0xff]
        %v722 = vld [vmem:[%s545 + $0x51] sm:$0xff]
        %v723 = vld [vmem:[%s545 + $0x61] sm:$0xff]
        %v724 = vld [vmem:[%s545 + $0x71] sm:$0xff]
        %733 = vrot.lane.b32.xlu0 %v717, 32
        %v734 = vpop.permute.xlu0 %733
        %735 = vrot.lane.b32.xlu0 %v718, 32
        %v736 = vpop.permute.xlu0 %735
        %737 = vrot.lane.b32.xlu0 %v719, 32
        %v738 = vpop.permute.xlu0 %737
        %739 = vrot.lane.b32.xlu0 %v720, 32
        %v740 = vpop.permute.xlu0 %739
        %741 = vrot.lane.b32.xlu0 %v721, 32
        %v742 = vpop.permute.xlu0 %741
        %743 = vrot.lane.b32.xlu0 %v722, 32
        %v744 = vpop.permute.xlu0 %743
        %745 = vrot.lane.b32.xlu0 %v723, 32
        %v746 = vpop.permute.xlu0 %745
        %747 = vrot.lane.b32.xlu0 %v724, 32
        %v748 = vpop.permute.xlu0 %747
        %vm757 = vcmask 326912
        %758 = vst.msk [vmem:[#allocation4] sm:$0xff] %vm757, %v734
        %759 = vst.msk [vmem:[#allocation4 + $0x8] sm:$0xff] %vm757, %v736
        %760 = vst.msk [vmem:[#allocation4 + $0x10] sm:$0xff] %vm757, %v738
        %761 = vst.msk [vmem:[#allocation4 + $0x18] sm:$0xff] %vm757, %v740
        %762 = vst.msk [vmem:[#allocation4 + $0x20] sm:$0xff] %vm757, %v742
        %763 = vst.msk [vmem:[#allocation4 + $0x28] sm:$0xff] %vm757, %v744
        %764 = vst.msk [vmem:[#allocation4 + $0x30] sm:$0xff] %vm757, %v746
        %765 = vst.msk [vmem:[#allocation4 + $0x38] sm:$0xff] %vm757, %v748
        %v766 = vld [vmem:[%s545 + $0x2] sm:$0xff]
        %v767 = vld [vmem:[%s545 + $0x12] sm:$0xff]
        %v768 = vld [vmem:[%s545 + $0x22] sm:$0xff]
        %v769 = vld [vmem:[%s545 + $0x32] sm:$0xff]
        %v770 = vld [vmem:[%s545 + $0x42] sm:$0xff]
        %v771 = vld [vmem:[%s545 + $0x52] sm:$0xff]
        %v772 = vld [vmem:[%s545 + $0x62] sm:$0xff]
        %v773 = vld [vmem:[%s545 + $0x72] sm:$0xff]
        %782 = vrot.lane.b32.xlu0 %v766, 40
        %v783 = vpop.permute.xlu0 %782
        %784 = vrot.lane.b32.xlu0 %v767, 40
        %v785 = vpop.permute.xlu0 %784
        %786 = vrot.lane.b32.xlu0 %v768, 40
        %v787 = vpop.permute.xlu0 %786
        %788 = vrot.lane.b32.xlu0 %v769, 40
        %v789 = vpop.permute.xlu0 %788
        %790 = vrot.lane.b32.xlu0 %v770, 40
        %v791 = vpop.permute.xlu0 %790
        %792 = vrot.lane.b32.xlu0 %v771, 40
        %v793 = vpop.permute.xlu0 %792
        %794 = vrot.lane.b32.xlu0 %v772, 40
        %v795 = vpop.permute.xlu0 %794
        %796 = vrot.lane.b32.xlu0 %v773, 40
        %v797 = vpop.permute.xlu0 %796
        %vm806 = vcmask 392512
        %807 = vst.msk [vmem:[#allocation4] sm:$0xff] %vm806, %v783
        %808 = vst.msk [vmem:[#allocation4 + $0x8] sm:$0xff] %vm806, %v785
        %809 = vst.msk [vmem:[#allocation4 + $0x10] sm:$0xff] %vm806, %v787
        %810 = vst.msk [vmem:[#allocation4 + $0x18] sm:$0xff] %vm806, %v789
        %811 = vst.msk [vmem:[#allocation4 + $0x20] sm:$0xff] %vm806, %v791
        %812 = vst.msk [vmem:[#allocation4 + $0x28] sm:$0xff] %vm806, %v793
        %813 = vst.msk [vmem:[#allocation4 + $0x30] sm:$0xff] %vm806, %v795
        %814 = vst.msk [vmem:[#allocation4 + $0x38] sm:$0xff] %vm806, %v797
        %s815 = scalar_lea.vmem [#allocation3], 32
        %v816 = vld [vmem:[%s815] sm:$0xff]
        %v817 = vld [vmem:[%s815 + $0x10] sm:$0xff]
        %v818 = vld [vmem:[%s815 + $0x20] sm:$0xff]
        %v819 = vld [vmem:[%s815 + $0x30] sm:$0xff]
        %v820 = vld [vmem:[%s815 + $0x40] sm:$0xff]
        %v821 = vld [vmem:[%s815 + $0x50] sm:$0xff]
        %v822 = vld [vmem:[%s815 + $0x60] sm:$0xff]
        %v823 = vld [vmem:[%s815 + $0x70] sm:$0xff]
        %832 = vrot.lane.b32.xlu0 %v816, 48
        %v833 = vpop.permute.xlu0 %832
        %834 = vrot.lane.b32.xlu0 %v817, 48
        %v835 = vpop.permute.xlu0 %834
        %836 = vrot.lane.b32.xlu0 %v818, 48
        %v837 = vpop.permute.xlu0 %836
        %838 = vrot.lane.b32.xlu0 %v819, 48
        %v839 = vpop.permute.xlu0 %838
        %840 = vrot.lane.b32.xlu0 %v820, 48
        %v841 = vpop.permute.xlu0 %840
        %842 = vrot.lane.b32.xlu0 %v821, 48
        %v843 = vpop.permute.xlu0 %842
        %844 = vrot.lane.b32.xlu0 %v822, 48
        %v845 = vpop.permute.xlu0 %844
        %846 = vrot.lane.b32.xlu0 %v823, 48
        %v847 = vpop.permute.xlu0 %846
        %vm856 = vcmask 458112
        %857 = vst.msk [vmem:[#allocation4] sm:$0xff] %vm856, %v833
        %858 = vst.msk [vmem:[#allocation4 + $0x8] sm:$0xff] %vm856, %v835
        %859 = vst.msk [vmem:[#allocation4 + $0x10] sm:$0xff] %vm856, %v837
        %860 = vst.msk [vmem:[#allocation4 + $0x18] sm:$0xff] %vm856, %v839
        %861 = vst.msk [vmem:[#allocation4 + $0x20] sm:$0xff] %vm856, %v841
        %862 = vst.msk [vmem:[#allocation4 + $0x28] sm:$0xff] %vm856, %v843
        %863 = vst.msk [vmem:[#allocation4 + $0x30] sm:$0xff] %vm856, %v845
        %864 = vst.msk [vmem:[#allocation4 + $0x38] sm:$0xff] %vm856, %v847
        %v865 = vld [vmem:[%s815 + $0x1] sm:$0xff]
        %v866 = vld [vmem:[%s815 + $0x11] sm:$0xff]
        %v867 = vld [vmem:[%s815 + $0x21] sm:$0xff]
        %v868 = vld [vmem:[%s815 + $0x31] sm:$0xff]
        %v869 = vld [vmem:[%s815 + $0x41] sm:$0xff]
        %v870 = vld [vmem:[%s815 + $0x51] sm:$0xff]
        %v871 = vld [vmem:[%s815 + $0x61] sm:$0xff]
        %v872 = vld [vmem:[%s815 + $0x71] sm:$0xff]
        %881 = vrot.lane.b32.xlu0 %v865, 56
        %v882 = vpop.permute.xlu0 %881
        %883 = vrot.lane.b32.xlu0 %v866, 56
        %v884 = vpop.permute.xlu0 %883
        %885 = vrot.lane.b32.xlu0 %v867, 56
        %v886 = vpop.permute.xlu0 %885
        %887 = vrot.lane.b32.xlu0 %v868, 56
        %v888 = vpop.permute.xlu0 %887
        %889 = vrot.lane.b32.xlu0 %v869, 56
        %v890 = vpop.permute.xlu0 %889
        %891 = vrot.lane.b32.xlu0 %v870, 56
        %v892 = vpop.permute.xlu0 %891
        %893 = vrot.lane.b32.xlu0 %v871, 56
        %v894 = vpop.permute.xlu0 %893
        %895 = vrot.lane.b32.xlu0 %v872, 56
        %v896 = vpop.permute.xlu0 %895
        %vm905 = vcmask 523712
        %906 = vst.msk [vmem:[#allocation4] sm:$0xff] %vm905, %v882
        %907 = vst.msk [vmem:[#allocation4 + $0x8] sm:$0xff] %vm905, %v884
        %908 = vst.msk [vmem:[#allocation4 + $0x10] sm:$0xff] %vm905, %v886
        %909 = vst.msk [vmem:[#allocation4 + $0x18] sm:$0xff] %vm905, %v888
        %910 = vst.msk [vmem:[#allocation4 + $0x20] sm:$0xff] %vm905, %v890
        %911 = vst.msk [vmem:[#allocation4 + $0x28] sm:$0xff] %vm905, %v892
        %912 = vst.msk [vmem:[#allocation4 + $0x30] sm:$0xff] %vm905, %v894
        %913 = vst.msk [vmem:[#allocation4 + $0x38] sm:$0xff] %vm905, %v896
        %v914 = vld [vmem:[%s815 + $0x2] sm:$0xff]
        %v915 = vld [vmem:[%s815 + $0x12] sm:$0xff]
        %v916 = vld [vmem:[%s815 + $0x22] sm:$0xff]
        %v917 = vld [vmem:[%s815 + $0x32] sm:$0xff]
        %v918 = vld [vmem:[%s815 + $0x42] sm:$0xff]
        %v919 = vld [vmem:[%s815 + $0x52] sm:$0xff]
        %v920 = vld [vmem:[%s815 + $0x62] sm:$0xff]
        %v921 = vld [vmem:[%s815 + $0x72] sm:$0xff]
        %930 = vrot.lane.b32.xlu0 %v914, 64
        %v931 = vpop.permute.xlu0 %930
        %932 = vrot.lane.b32.xlu0 %v915, 64
        %v933 = vpop.permute.xlu0 %932
        %934 = vrot.lane.b32.xlu0 %v916, 64
        %v935 = vpop.permute.xlu0 %934
        %936 = vrot.lane.b32.xlu0 %v917, 64
        %v937 = vpop.permute.xlu0 %936
        %938 = vrot.lane.b32.xlu0 %v918, 64
        %v939 = vpop.permute.xlu0 %938
        %940 = vrot.lane.b32.xlu0 %v919, 64
        %v941 = vpop.permute.xlu0 %940
        %942 = vrot.lane.b32.xlu0 %v920, 64
        %v943 = vpop.permute.xlu0 %942
        %944 = vrot.lane.b32.xlu0 %v921, 64
        %v945 = vpop.permute.xlu0 %944
        %vm954 = vcmask 589312
        %955 = vst.msk [vmem:[#allocation4] sm:$0xff] %vm954, %v931
        %956 = vst.msk [vmem:[#allocation4 + $0x8] sm:$0xff] %vm954, %v933
        %957 = vst.msk [vmem:[#allocation4 + $0x10] sm:$0xff] %vm954, %v935
        %958 = vst.msk [vmem:[#allocation4 + $0x18] sm:$0xff] %vm954, %v937
        %959 = vst.msk [vmem:[#allocation4 + $0x20] sm:$0xff] %vm954, %v939
        %960 = vst.msk [vmem:[#allocation4 + $0x28] sm:$0xff] %vm954, %v941
        %961 = vst.msk [vmem:[#allocation4 + $0x30] sm:$0xff] %vm954, %v943
        %962 = vst.msk [vmem:[#allocation4 + $0x38] sm:$0xff] %vm954, %v945
        %v963 = vld [vmem:[#allocation4] sm:$0xff]
        %v964 = vld [vmem:[#allocation4 + $0x8] sm:$0xff]
        %v965 = vld [vmem:[#allocation4 + $0x10] sm:$0xff]
        %v966 = vld [vmem:[#allocation4 + $0x18] sm:$0xff]
        %v967 = vld [vmem:[#allocation4 + $0x20] sm:$0xff]
        %v968 = vld [vmem:[#allocation4 + $0x28] sm:$0xff]
        %v969 = vld [vmem:[#allocation4 + $0x30] sm:$0xff]
        %v970 = vld [vmem:[#allocation4 + $0x38] sm:$0xff]
        %v971 = vld [vmem:[%s3] sm:$0xff]
        %v972 = vld [vmem:[%s3 + $0x8] sm:$0xff]
        %v973 = vld [vmem:[%s3 + $0x10] sm:$0xff]
        %v974 = vld [vmem:[%s3 + $0x18] sm:$0xff]
        %v975 = vld [vmem:[%s3 + $0x20] sm:$0xff]
        %v976 = vld [vmem:[%s3 + $0x28] sm:$0xff]
        %v977 = vld [vmem:[%s3 + $0x30] sm:$0xff]
        %v978 = vld [vmem:[%s3 + $0x38] sm:$0xff]
        %v979 = vld [vmem:[%s3 + $0x40] sm:$0xff]
        %vm980 = vcmask 588800
        %v982 = vsel %vm980, %v963, 0
        %v985 = vsel %vm980, %v964, 0
        %v988 = vsel %vm980, %v965, 0
        %v991 = vsel %vm980, %v966, 0
        %v994 = vsel %vm980, %v967, 0
        %v997 = vsel %vm980, %v968, 0
        %v1000 = vsel %vm980, %v969, 0
        %v1003 = vsel %vm980, %v970, 0
        %1005 = vmatpush.msra.mxu0 0.0
        %1006 = vmatpush.msra.mxu0 0.0
        %1007 = vmatpush.msra.mxu0 0.0
        %1008 = vmatpush.msra.mxu0 0.0
        %1009 = vmatpush.msra.mxu0 0.0
        %1010 = vmatpush.msra.mxu0 0.0
        %1011 = vmatpush.msra.mxu0 0.0
        %1012 = vmatpush.msra.mxu0 %v979
        %1013 = vmatpush.msra.mxu0 %v978
        %1014 = vmatpush.msra.mxu0 %v977
        %1015 = vmatpush.msra.mxu0 %v976
        %1016 = vmatpush.msra.mxu0 %v975
        %1017 = vmatpush.msra.mxu0 %v974
        %1018 = vmatpush.msra.mxu0 %v973
        %1019 = vmatpush.msra.mxu0 %v972
        %1020 = vmatpush.msra.mxu0 %v971
        %1021 = vmatmul.f32.gmra.mxu0 %v982
        %v1022 = vpop.f32.mrf.mxu0
        %v1023 = vadd.f32 0.0, %v1022
        %1024 = vmatmul.f32.gmra.mxu0 %v985
        %v1025 = vpop.f32.mrf.mxu0
        %v1026 = vadd.f32 0.0, %v1025
        %1027 = vmatmul.f32.gmra.mxu0 %v988
        %v1028 = vpop.f32.mrf.mxu0
        %v1029 = vadd.f32 0.0, %v1028
        %1030 = vmatmul.f32.gmra.mxu0 %v991
        %v1031 = vpop.f32.mrf.mxu0
        %v1032 = vadd.f32 0.0, %v1031
        %1033 = vmatmul.f32.gmra.mxu0 %v994
        %v1034 = vpop.f32.mrf.mxu0
        %v1035 = vadd.f32 0.0, %v1034
        %1036 = vmatmul.f32.gmra.mxu0 %v997
        %v1037 = vpop.f32.mrf.mxu0
        %v1038 = vadd.f32 0.0, %v1037
        %1039 = vmatmul.f32.gmra.mxu0 %v1000
        %v1040 = vpop.f32.mrf.mxu0
        %v1041 = vadd.f32 0.0, %v1040
        %1042 = vmatmul.f32.gmra.mxu0 %v1003
        %v1043 = vpop.f32.mrf.mxu0
        %v1044 = vadd.f32 0.0, %v1043
        %1045 = vdwg.mxu0
        %1046 = vmatpush.msra.mxu0 0.0
        %1047 = vmatpush.msra.mxu0 0.0
        %1048 = vmatpush.msra.mxu0 0.0
        %1049 = vmatpush.msra.mxu0 0.0
        %1050 = vmatpush.msra.mxu0 0.0
        %1051 = vmatpush.msra.mxu0 0.0
        %1052 = vmatpush.msra.mxu0 0.0
        %1053 = vmatpush.msra.mxu0 0.0
        %1054 = vmatpush.msra.mxu0 %v516
        %1055 = vmatpush.msra.mxu0 %v515
        %1056 = vmatpush.msra.mxu0 %v514
        %1057 = vmatpush.msra.mxu0 %v513
        %1058 = vmatpush.msra.mxu0 %v512
        %1059 = vmatpush.msra.mxu0 %v511
        %1060 = vmatpush.msra.mxu0 %v510
        %1061 = vmatpush.msra.mxu0 %v509
        %1062 = vmatmul.f32.gmra.mxu0 %v437
        %v1063 = vpop.f32.mrf.mxu0
        %v1064 = vadd.f32 %v1023, %v1063
        %1065 = vmatmul.f32.gmra.mxu0 %v440
        %v1066 = vpop.f32.mrf.mxu0
        %v1067 = vadd.f32 %v1026, %v1066
        %1068 = vmatmul.f32.gmra.mxu0 %v443
        %v1069 = vpop.f32.mrf.mxu0
        %v1070 = vadd.f32 %v1029, %v1069
        %1071 = vmatmul.f32.gmra.mxu0 %v446
        %v1072 = vpop.f32.mrf.mxu0
        %v1073 = vadd.f32 %v1032, %v1072
        %1074 = vmatmul.f32.gmra.mxu0 %v449
        %v1075 = vpop.f32.mrf.mxu0
        %v1076 = vadd.f32 %v1035, %v1075
        %1077 = vmatmul.f32.gmra.mxu0 %v452
        %v1078 = vpop.f32.mrf.mxu0
        %v1079 = vadd.f32 %v1038, %v1078
        %1080 = vmatmul.f32.gmra.mxu0 %v455
        %v1081 = vpop.f32.mrf.mxu0
        %v1082 = vadd.f32 %v1041, %v1081
        %1083 = vmatmul.f32.gmra.mxu0 %v458
        %v1084 = vpop.f32.mrf.mxu0
        %v1085 = vadd.f32 %v1044, %v1084
        %1086 = vdwg.mxu0
        %v1087 = vld [vmem:[%s5] sm:$0x1]
        %v1089 = vperm.slane %v1087, 0
        %v1091 = vadd.f32 %v1064, %v1089
        %v1092 = vadd.f32 %v1067, %v1089
        %v1093 = vadd.f32 %v1070, %v1089
        %v1094 = vadd.f32 %v1073, %v1089
        %v1095 = vadd.f32 %v1076, %v1089
        %v1096 = vadd.f32 %v1079, %v1089
        %v1097 = vadd.f32 %v1082, %v1089
        %v1098 = vadd.f32 %v1085, %v1089
        %v1099 = vmax.f32 %v1091, 0.0
        %v1100 = vmax.f32 %v1092, 0.0
        %v1101 = vmax.f32 %v1093, 0.0
        %v1102 = vmax.f32 %v1094, 0.0
        %v1103 = vmax.f32 %v1095, 0.0
        %v1104 = vmax.f32 %v1096, 0.0
        %v1105 = vmax.f32 %v1097, 0.0
        %v1106 = vmax.f32 %v1098, 0.0
        %1107 = vst.msk [vmem:[%s244] sm:$0xff] %vm517, %v1099
        %1108 = vst.msk [vmem:[%s244 + $0x8] sm:$0xff] %vm517, %v1100
        %1109 = vst.msk [vmem:[%s244 + $0x10] sm:$0xff] %vm517, %v1101
        %1110 = vst.msk [vmem:[%s244 + $0x18] sm:$0xff] %vm517, %v1102
        %1111 = vst.msk [vmem:[%s244 + $0x20] sm:$0xff] %vm517, %v1103
        %1112 = vst.msk [vmem:[%s244 + $0x28] sm:$0xff] %vm517, %v1104
        %1113 = vst.msk [vmem:[%s244 + $0x30] sm:$0xff] %vm517, %v1105
        %1114 = vst.msk [vmem:[%s244 + $0x38] sm:$0xff] %vm517, %v1106
        %s1115 = sand.u32 %s159, 1
        %s1116 = scalar_lea.sflag [#allocation6], %s1115
        %s1117 = sand.u32 %s159, 1
        %s1118 = smul.addr %s1117, 64
        %s1119 = scalar_lea.vmem [#allocation5], %s1118
        // Predicated region
        $region45: #{_lambda_.1} parent=43 // pred_check
          %p1120 = pneg %p169
        $region46: #{_lambda_.1} parent=43 // pred_check_branch
          %1122 = sbr.rel (%p1120) target = $region48
        $region47: #{_lambda_.1} parent=43 // pred_region
          %1124 = vsyncadd %s1116, 0
          %s1125 = smul.addr %s20, 8
          %s1126 = smul.addr %s1125, 8
          %s1127 = scalar_lea.hbm %s6, %s1126
          %s1128 = sshll.u32 %s1119, 4
          %s1129 = int_to_ptr.vmem [resolvable:$true] %s1128
          %s1130 = sshll.u32 %s1127, 4
          %s1131 = int_to_ptr.hbm [resolvable:$true] %s1130
          %1136 = dma.vmem_to_hbm [thread:$0]  %s1129, 1024, %s1131, %s1116, 128, 128, 8
        $region48: #{_lambda_.1} parent=43 // pred_fallthru
          _
      $region44: #{_lambda_.1} parent=5 // pred_fallthru
        _
      %p1137 = scmp.le.s32.totalorder 2, %s15
      // Predicated region
      $region49: #{_lambda_.1} parent=5 // pred_check
        %p1138 = pneg %p1137
      $region50: #{_lambda_.1} parent=5 // pred_check_branch
        %1140 = sbr.rel (%p1138) target = $region52
      $region51: #{_lambda_.1} parent=5 // pred_region
        %s1141 = ssub.s32 %s15, 2
        // Predicated region
        $region53: #{_lambda_.1} parent=51 // pred_check
          %p1142 = pneg %p175
        $region54: #{_lambda_.1} parent=51 // pred_check_branch
          %1144 = sbr.rel (%p1142) target = $region56
        $region55: #{_lambda_.1} parent=51 // pred_region
          %s1145 = sand.u32 %s160, 1
          %s1146 = scalar_lea.sflag [#allocation6], %s1145
          %s1147 = sand.u32 %s160, 1
          %s1148 = smul.addr %s1147, 64
          %s1149 = scalar_lea.vmem [#allocation5], %s1148
          %1151 = dma.done %s1146, 1024
        $region56: #{_lambda_.1} parent=51 // pred_fallthru
          _
      $region52: #{_lambda_.1} parent=5 // pred_fallthru
        _
    $region6: #{_lambda_.1} parent=1 // loop_footer
      %s19 = sadd.s32 1, %s15
    $region7: #{_lambda_.1} parent=1 // loop_footer_branch
      %14 = sbr.rel target = $region3
    $region8: #{_lambda_.1} parent=1 // loop_exit
      _
    %1152 = vsyncpa [#allocation6], 1
    %s1153 = scalar_lea.sflag [#allocation6], 1
    %1154 = vsyncpa %s1153, 1

</llo_original>
